<compile_context>
chip_gen: v7x
topology: tpu7x:2x2x1
jax: 0.10.0
libtpu: 0.0.40
codegen_flags: <defaults>
</compile_context>

<pallas_src>
import functools

import jax
import jax.numpy as jnp
from jax.experimental import pallas as pl
from jax.experimental.pallas import tpu as pltpu

OUT_PAD = 128   # lane-dense padded width of the final output
D_ATT = 64      # attention feature dim fixed by the module (q/k/v are 64-wide)


def _round_up(x, m):
    return ((x + m - 1) // m) * m


# ---------------------------------------------------------------------------
# Fused Pallas kernel: q/k/v MLPs + task mean + outer-product attention +
# softmax + dueling Q/V heads, for one batch tile.
# ---------------------------------------------------------------------------
def _self_attention_kernel(
    state_ref, emb_ref, avg_ref,
    wq1_ref, bq1_ref, wq2_ref, bq2_ref,
    wk1_ref, wk2_ref, wv1_ref, wv2_ref,
    wqh1_ref, bqh1_ref, wqh2_ref, bqh2_ref,
    wvh1_ref, bvh1_ref, wvh2_ref, bvh2_ref,
    out_ref,
    *, inv_temp: float, inv_n_out: float):
    f32 = jnp.float32
    dot = functools.partial(jnp.dot, preferred_element_type=f32)

    state = state_ref[...]          # [TB, S]
    emb = emb_ref[...]              # [TB*T, E]

    # ---- q path: Linear+ReLU per (batch, task), mean over tasks, Linear ----
    h = jnp.maximum(dot(emb, wq1_ref[...]) + bq1_ref[...], 0.0)     # [TB*T, 128]
    hm = dot(avg_ref[...], h)                                       # [TB, 128]  (mean over T tasks)
    q = dot(hm, wq2_ref[...]) + bq2_ref[...]                        # [TB, 64]

    # ---- k / v paths (bias-free two-layer MLPs) ----
    k = dot(jnp.maximum(dot(state, wk1_ref[...]), 0.0), wk2_ref[...])   # [TB, 64]
    v = dot(jnp.maximum(dot(state, wv1_ref[...]), 0.0), wv2_ref[...])   # [TB, 64]

    # ---- attention: attn[b,i,j] = softmax_j(q_i * k_j / temp); out = v @ attn ----
    s = q[:, :, None] * (k * inv_temp)[:, None, :]                  # [TB, 64, 64]
    m = jnp.max(s, axis=2, keepdims=True)                           # [TB, 64, 1]
    p = jnp.exp(s - m)                                              # [TB, 64, 64]
    d = jnp.sum(p, axis=2, keepdims=True)                           # [TB, 64, 1]
    # out_j = sum_i (v_i / d_i) * p_ij   (fold the softmax denom into v)
    att = jnp.sum((v[:, :, None] / d) * p, axis=1)                  # [TB, 64]

    # ---- dueling heads ----
    hq = jnp.maximum(dot(att, wqh1_ref[...]) + bqh1_ref[...], 0.0)  # [TB, QH]
    Q = dot(hq, wqh2_ref[...]) + bqh2_ref[...]                      # [TB, OUT_PAD] (cols >= n_out are 0)
    hv = jnp.maximum(dot(att, wvh1_ref[...]) + bvh1_ref[...], 0.0)  # [TB, VH]
    V = jnp.sum(hv * wvh2_ref[...], axis=1, keepdims=True) + bvh2_ref[...]   # [TB, 1]

    # mean over the REAL n_out columns only (padded columns are exactly zero)
    q_mean = jnp.sum(Q, axis=1, keepdims=True) * inv_n_out
    out_ref[...] = (Q - q_mean + V).astype(out_ref.dtype)


# ---------------------------------------------------------------------------
# Parameter setup (PyTorch nn.Linear conventions) + kernel-ready packing
# ---------------------------------------------------------------------------
def init_params(key, *, state_dim, em_dim, n_out, q_hidden=32, v_hidden=32):
    """nn.Linear-style params (weight [out, in], bias [out]), U(+-1/sqrt(fan_in))."""
    def linear(k, din, dout, bias=True):
        kw, kb = jax.random.split(k)
        bound = 1.0 / float(din) ** 0.5
        w = jax.random.uniform(kw, (dout, din), jnp.float32, -bound, bound)
        b = (jax.random.uniform(kb, (dout,), jnp.float32, -bound, bound)
             if bias else None)
        return w, b

    keys = jax.random.split(key, 10)
    p = {}
    p["q1_w"], p["q1_b"] = linear(keys[0], em_dim, 128)
    p["q2_w"], p["q2_b"] = linear(keys[1], 128, D_ATT)
    p["k1_w"], _ = linear(keys[2], state_dim, 128, bias=False)
    p["k2_w"], _ = linear(keys[3], 128, D_ATT, bias=False)
    p["v1_w"], _ = linear(keys[4], state_dim, 128, bias=False)
    p["v2_w"], _ = linear(keys[5], 128, D_ATT, bias=False)
    p["Q1_w"], p["Q1_b"] = linear(keys[6], D_ATT, q_hidden)
    p["Q2_w"], p["Q2_b"] = linear(keys[7], q_hidden, n_out)
    p["V1_w"], p["V1_b"] = linear(keys[8], D_ATT, v_hidden)
    p["V2_w"], p["V2_b"] = linear(keys[9], v_hidden, 1)
    return p


def pack_params(p, *, n_out):
    """Transpose to [in, out], make biases (1, out) rows, and lane-pad the final
    Q projection to OUT_PAD columns.  Done ONCE, outside the forward pass."""
    assert n_out <= OUT_PAD
    t = lambda w: jnp.asarray(w).T
    row = lambda b: jnp.asarray(b).reshape(1, -1)
    packed = {
        "wq1": t(p["q1_w"]), "bq1": row(p["q1_b"]),
        "wq2": t(p["q2_w"]), "bq2": row(p["q2_b"]),
        "wk1": t(p["k1_w"]), "wk2": t(p["k2_w"]),
        "wv1": t(p["v1_w"]), "wv2": t(p["v2_w"]),
        "wqh1": t(p["Q1_w"]), "bqh1": row(p["Q1_b"]),
        "wvh1": t(p["V1_w"]), "bvh1": row(p["V1_b"]),
        "wvh2": jnp.asarray(p["V2_w"]),            # [1, VH] used as a row vector
        "bvh2": row(p["V2_b"]),                    # [1, 1]
    }
    pad = OUT_PAD - n_out
    packed["wqh2"] = jnp.pad(t(p["Q2_w"]), ((0, 0), (0, pad)))
    packed["bqh2"] = jnp.pad(row(p["Q2_b"]), ((0, 0), (0, pad)))
    return packed


_WEIGHT_ORDER = ("wq1", "bq1", "wq2", "bq2", "wk1", "wk2", "wv1", "wv2",
                 "wqh1", "bqh1", "wqh2", "bqh2", "wvh1", "bvh1", "wvh2", "bvh2")


# ---------------------------------------------------------------------------
# Forward pass wrapper (single fused pallas_call)
# ---------------------------------------------------------------------------
@functools.partial(jax.jit,
                   static_argnames=("state_dim", "em_dim", "task_num", "n_out"))
def self_attention_forward(packed, x, *, state_dim, em_dim, task_num, n_out):
    B = x.shape[0]
    S, E, T = state_dim, em_dim, task_num
    x = x.astype(jnp.float32)

    # torch.split + torch.reshape([-1, T, E]) (row-major), flattened to 2-D.
    state = x[:, :S]                          # [B, S]
    emb = x[:, S:].reshape(B * T, E)          # [B*T, E]

    # Batch tile: multiple of 8 sublanes, capped at 128 rows so per-step VMEM
    # (incl. the [TB,64,64] attention tensor) stays well under v7x's 64 MiB.
    tb = min(128, _round_up(B, 8))
    b_pad = _round_up(B, tb)
    if b_pad != B:
        state = jnp.pad(state, ((0, b_pad - B), (0, 0)))
        emb = jnp.pad(emb, ((0, (b_pad - B) * T, ), (0, 0)))

    # Per-tile task-averaging matrix: mean over T tasks as one small MXU matmul.
    rows = jnp.arange(tb, dtype=jnp.int32)[:, None]
    cols = jnp.arange(tb * T, dtype=jnp.int32)[None, :]
    avg = jnp.where(cols // T == rows, 1.0 / T, 0.0).astype(jnp.float32)

    inv_temp = 1.0 / (float(B) ** 0.5)        # torch: temperature = k.shape[0] ** 0.5 (= batch)
    inv_n_out = 1.0 / float(n_out)

    weights = [packed[name] for name in _WEIGHT_ORDER]
    batch_spec = lambda shape: pl.BlockSpec(shape, lambda i: (i, 0))
    const_spec = lambda arr: pl.BlockSpec(arr.shape, lambda i: (0, 0))

    kernel = functools.partial(_self_attention_kernel,
                               inv_temp=inv_temp, inv_n_out=inv_n_out)
    out_pad = pl.pallas_call(
        kernel,
        out_shape=jax.ShapeDtypeStruct((b_pad, OUT_PAD), jnp.float32),
        grid=(b_pad // tb,),
        in_specs=[batch_spec((tb, S)),           # state tile
                  batch_spec((tb * T, E)),       # embedding tile (tasks flattened)
                  const_spec(avg)]               # task-mean matrix (VMEM resident)
                 + [const_spec(w) for w in weights],
        out_specs=pl.BlockSpec((tb, OUT_PAD), lambda i: (i, 0)),
        compiler_params=pltpu.CompilerParams(
            dimension_semantics=("parallel",)),
    )(state, emb, avg, *weights)

    # drop batch padding and the lane padding of the output
    return out_pad[:B, :n_out]


# ---------------------------------------------------------------------------
# Pure-JAX reference (same math, unfused) for the correctness check
# ---------------------------------------------------------------------------
def self_attention_forward_ref(p, x, *, state_dim, em_dim, task_num, n_out):
    B = x.shape[0]
    S, E, T = state_dim, em_dim, task_num
    x = x.astype(jnp.float32)
    state = x[:, :S]
    emb = x[:, S:].reshape(B, T, E)

    q = jnp.maximum(emb @ p["q1_w"].T + p["q1_b"], 0.0) @ p["q2_w"].T + p["q2_b"]
    q = q.mean(axis=1)                                              # [B, 64]
    k = jnp.maximum(state @ p["k1_w"].T, 0.0) @ p["k2_w"].T         # [B, 64]
    v = jnp.maximum(state @ p["v1_w"].T, 0.0) @ p["v2_w"].T         # [B, 64]

    temp = float(B) ** 0.5
    attn = jax.nn.softmax(q[:, :, None] * (k / temp)[:, None, :], axis=2)
    out = jnp.sum(v[:, :, None] * attn, axis=1)                     # [B, 64]

    Q = jnp.maximum(out @ p["Q1_w"].T + p["Q1_b"], 0.0) @ p["Q2_w"].T + p["Q2_b"]
    V = jnp.maximum(out @ p["V1_w"].T + p["V1_b"], 0.0) @ p["V2_w"].T + p["V2_b"]
    return Q - Q.mean(axis=1, keepdims=True) + V


if __name__ == "__main__":
    # SelfAttentionNet(output_shape=8, em_input_shape=16, state_input_shape=16,
    #                  task_num=3, hidden_type='MLP',
    #                  dueling_param=({'hidden_sizes': [32]}, {'hidden_sizes': [32]}))
    batch = 2
    state_dim = 16      # state_input_shape
    em_dim = 16         # em_input_shape
    task_num = 3
    n_out = 8           # output_shape
    q_hidden, v_hidden = 32, 32

    key = jax.random.PRNGKey(0)
    k_param, k_x = jax.random.split(key)
    params = init_params(k_param, state_dim=state_dim, em_dim=em_dim,
                         n_out=n_out, q_hidden=q_hidden, v_hidden=v_hidden)
    packed = pack_params(params, n_out=n_out)

    # x = concat([state_in (16), task0 emb (16), task1 emb (16), task2 emb (16)])
    x = jax.random.normal(k_x, (batch, state_dim + em_dim * task_num), jnp.float32)

    out = self_attention_forward(packed, x, state_dim=state_dim, em_dim=em_dim,
                                 task_num=task_num, n_out=n_out)
    out = jax.block_until_ready(out)
    # (the PyTorch module also returns `state` unchanged — trivial passthrough)

    ref = self_attention_forward_ref(params, x, state_dim=state_dim,
                                     em_dim=em_dim, task_num=task_num,
                                     n_out=n_out)
    assert out.shape == (batch, n_out)
    assert jnp.allclose(out, ref, atol=1e-3, rtol=1e-3), (
        "max abs diff = %g" % float(jnp.max(jnp.abs(out - ref))))

    print("KERNEL_OK")
</pallas_src>

<mosaic_0001>
module attributes {stable_mosaic.version = 11 : i64} {
  func.func @_self_attention_kernel(%arg0: i32, %arg1: memref<8x16xf32, #tpu.memory_space<vmem>>, %arg2: memref<24x16xf32, #tpu.memory_space<vmem>>, %arg3: memref<8x24xf32, #tpu.memory_space<vmem>>, %arg4: memref<16x128xf32, #tpu.memory_space<vmem>>, %arg5: memref<1x128xf32, #tpu.memory_space<vmem>>, %arg6: memref<128x64xf32, #tpu.memory_space<vmem>>, %arg7: memref<1x64xf32, #tpu.memory_space<vmem>>, %arg8: memref<16x128xf32, #tpu.memory_space<vmem>>, %arg9: memref<128x64xf32, #tpu.memory_space<vmem>>, %arg10: memref<16x128xf32, #tpu.memory_space<vmem>>, %arg11: memref<128x64xf32, #tpu.memory_space<vmem>>, %arg12: memref<64x32xf32, #tpu.memory_space<vmem>>, %arg13: memref<1x32xf32, #tpu.memory_space<vmem>>, %arg14: memref<32x128xf32, #tpu.memory_space<vmem>>, %arg15: memref<1x128xf32, #tpu.memory_space<vmem>>, %arg16: memref<64x32xf32, #tpu.memory_space<vmem>>, %arg17: memref<1x32xf32, #tpu.memory_space<vmem>>, %arg18: memref<1x32xf32, #tpu.memory_space<vmem>>, %arg19: memref<1x1xf32, #tpu.memory_space<vmem>>, %arg20: memref<8x128xf32, #tpu.memory_space<vmem>>) attributes {dimension_semantics = [#tpu.dimension_semantics<parallel>], iteration_bounds = array<i64: 1>, scalar_prefetch = 0 : i64, scratch_operands = 0 : i64, tpu.core_type = #tpu.core_type<tc>, window_params = [{transform_indices = @transform_0, window_bounds = array<i64: 8, 16>}, {transform_indices = @transform_1, window_bounds = array<i64: 24, 16>}, {pipeline_mode = #tpu.pipeline_mode<synchronous>, transform_indices = @transform_2, window_bounds = array<i64: 8, 24>}, {pipeline_mode = #tpu.pipeline_mode<synchronous>, transform_indices = @transform_3, window_bounds = array<i64: 16, 128>}, {pipeline_mode = #tpu.pipeline_mode<synchronous>, transform_indices = @transform_4, window_bounds = array<i64: 1, 128>}, {pipeline_mode = #tpu.pipeline_mode<synchronous>, transform_indices = @transform_5, window_bounds = array<i64: 128, 64>}, {pipeline_mode = #tpu.pipeline_mode<synchronous>, transform_indices = @transform_6, window_bounds = array<i64: 1, 64>}, {pipeline_mode = #tpu.pipeline_mode<synchronous>, transform_indices = @transform_7, window_bounds = array<i64: 16, 128>}, {pipeline_mode = #tpu.pipeline_mode<synchronous>, transform_indices = @transform_8, window_bounds = array<i64: 128, 64>}, {pipeline_mode = #tpu.pipeline_mode<synchronous>, transform_indices = @transform_9, window_bounds = array<i64: 16, 128>}, {pipeline_mode = #tpu.pipeline_mode<synchronous>, transform_indices = @transform_10, window_bounds = array<i64: 128, 64>}, {pipeline_mode = #tpu.pipeline_mode<synchronous>, transform_indices = @transform_11, window_bounds = array<i64: 64, 32>}, {pipeline_mode = #tpu.pipeline_mode<synchronous>, transform_indices = @transform_12, window_bounds = array<i64: 1, 32>}, {pipeline_mode = #tpu.pipeline_mode<synchronous>, transform_indices = @transform_13, window_bounds = array<i64: 32, 128>}, {pipeline_mode = #tpu.pipeline_mode<synchronous>, transform_indices = @transform_14, window_bounds = array<i64: 1, 128>}, {pipeline_mode = #tpu.pipeline_mode<synchronous>, transform_indices = @transform_15, window_bounds = array<i64: 64, 32>}, {pipeline_mode = #tpu.pipeline_mode<synchronous>, transform_indices = @transform_16, window_bounds = array<i64: 1, 32>}, {pipeline_mode = #tpu.pipeline_mode<synchronous>, transform_indices = @transform_17, window_bounds = array<i64: 1, 32>}, {pipeline_mode = #tpu.pipeline_mode<synchronous>, transform_indices = @transform_18, window_bounds = array<i64: 1, 1>}, {transform_indices = @transform_19, window_bounds = array<i64: 8, 128>}]} {
    %c0 = arith.constant 0 : index
    %c0_0 = arith.constant 0 : index
    %0 = vector.load %arg1[%c0, %c0_0] : memref<8x16xf32, #tpu.memory_space<vmem>>, vector<8x16xf32>
    %c0_1 = arith.constant 0 : index
    %c0_2 = arith.constant 0 : index
    %1 = vector.load %arg2[%c0_1, %c0_2] : memref<24x16xf32, #tpu.memory_space<vmem>>, vector<24x16xf32>
    %c0_3 = arith.constant 0 : index
    %c0_4 = arith.constant 0 : index
    %2 = vector.load %arg4[%c0_3, %c0_4] : memref<16x128xf32, #tpu.memory_space<vmem>>, vector<16x128xf32>
    %cst = arith.constant dense<0.000000e+00> : vector<24x128xf32>
    %3 = tpu.matmul %1, %2, %cst {dimension_numbers = #tpu.dot_dimension_numbers<[1], [0], [0], [1], [0, 0, 1, 1], [], []>} : vector<24x16xf32>, vector<16x128xf32>, vector<24x128xf32> -> vector<24x128xf32>
    %c0_5 = arith.constant 0 : index
    %c0_6 = arith.constant 0 : index
    %4 = vector.load %arg5[%c0_5, %c0_6] : memref<1x128xf32, #tpu.memory_space<vmem>>, vector<1x128xf32>
    %5 = vector.broadcast %4 : vector<1x128xf32> to vector<24x128xf32>
    %6 = arith.addf %3, %5 : vector<24x128xf32>
    %cst_7 = arith.constant 0.000000e+00 : f32
    %7 = vector.broadcast %cst_7 : f32 to vector<24x128xf32>
    %8 = arith.maximumf %6, %7 : vector<24x128xf32>
    %c0_8 = arith.constant 0 : index
    %c0_9 = arith.constant 0 : index
    %9 = vector.load %arg3[%c0_8, %c0_9] : memref<8x24xf32, #tpu.memory_space<vmem>>, vector<8x24xf32>
    %cst_10 = arith.constant dense<0.000000e+00> : vector<8x128xf32>
    %10 = tpu.matmul %9, %8, %cst_10 {dimension_numbers = #tpu.dot_dimension_numbers<[1], [0], [0], [1], [0, 0, 1, 1], [], []>} : vector<8x24xf32>, vector<24x128xf32>, vector<8x128xf32> -> vector<8x128xf32>
    %c0_11 = arith.constant 0 : index
    %c0_12 = arith.constant 0 : index
    %11 = vector.load %arg6[%c0_11, %c0_12] : memref<128x64xf32, #tpu.memory_space<vmem>>, vector<128x64xf32>
    %cst_13 = arith.constant dense<0.000000e+00> : vector<8x64xf32>
    %12 = tpu.matmul %10, %11, %cst_13 {dimension_numbers = #tpu.dot_dimension_numbers<[1], [0], [0], [1], [0, 0, 1, 1], [], []>} : vector<8x128xf32>, vector<128x64xf32>, vector<8x64xf32> -> vector<8x64xf32>
    %c0_14 = arith.constant 0 : index
    %c0_15 = arith.constant 0 : index
    %13 = vector.load %arg7[%c0_14, %c0_15] : memref<1x64xf32, #tpu.memory_space<vmem>>, vector<1x64xf32>
    %14 = vector.broadcast %13 : vector<1x64xf32> to vector<8x64xf32>
    %15 = arith.addf %12, %14 : vector<8x64xf32>
    %c0_16 = arith.constant 0 : index
    %c0_17 = arith.constant 0 : index
    %16 = vector.load %arg8[%c0_16, %c0_17] : memref<16x128xf32, #tpu.memory_space<vmem>>, vector<16x128xf32>
    %cst_18 = arith.constant dense<0.000000e+00> : vector<8x128xf32>
    %17 = tpu.matmul %0, %16, %cst_18 {dimension_numbers = #tpu.dot_dimension_numbers<[1], [0], [0], [1], [0, 0, 1, 1], [], []>} : vector<8x16xf32>, vector<16x128xf32>, vector<8x128xf32> -> vector<8x128xf32>
    %cst_19 = arith.constant 0.000000e+00 : f32
    %18 = vector.broadcast %cst_19 : f32 to vector<8x128xf32>
    %19 = arith.maximumf %17, %18 : vector<8x128xf32>
    %c0_20 = arith.constant 0 : index
    %c0_21 = arith.constant 0 : index
    %20 = vector.load %arg9[%c0_20, %c0_21] : memref<128x64xf32, #tpu.memory_space<vmem>>, vector<128x64xf32>
    %cst_22 = arith.constant dense<0.000000e+00> : vector<8x64xf32>
    %21 = tpu.matmul %19, %20, %cst_22 {dimension_numbers = #tpu.dot_dimension_numbers<[1], [0], [0], [1], [0, 0, 1, 1], [], []>} : vector<8x128xf32>, vector<128x64xf32>, vector<8x64xf32> -> vector<8x64xf32>
    %c0_23 = arith.constant 0 : index
    %c0_24 = arith.constant 0 : index
    %22 = vector.load %arg10[%c0_23, %c0_24] : memref<16x128xf32, #tpu.memory_space<vmem>>, vector<16x128xf32>
    %cst_25 = arith.constant dense<0.000000e+00> : vector<8x128xf32>
    %23 = tpu.matmul %0, %22, %cst_25 {dimension_numbers = #tpu.dot_dimension_numbers<[1], [0], [0], [1], [0, 0, 1, 1], [], []>} : vector<8x16xf32>, vector<16x128xf32>, vector<8x128xf32> -> vector<8x128xf32>
    %cst_26 = arith.constant 0.000000e+00 : f32
    %24 = vector.broadcast %cst_26 : f32 to vector<8x128xf32>
    %25 = arith.maximumf %23, %24 : vector<8x128xf32>
    %c0_27 = arith.constant 0 : index
    %c0_28 = arith.constant 0 : index
    %26 = vector.load %arg11[%c0_27, %c0_28] : memref<128x64xf32, #tpu.memory_space<vmem>>, vector<128x64xf32>
    %cst_29 = arith.constant dense<0.000000e+00> : vector<8x64xf32>
    %27 = tpu.matmul %25, %26, %cst_29 {dimension_numbers = #tpu.dot_dimension_numbers<[1], [0], [0], [1], [0, 0, 1, 1], [], []>} : vector<8x128xf32>, vector<128x64xf32>, vector<8x64xf32> -> vector<8x64xf32>
    %28 = vector.shape_cast %15 : vector<8x64xf32> to vector<8x64x1xf32>
    %cst_30 = arith.constant 0.707106769 : f32
    %29 = vector.broadcast %cst_30 : f32 to vector<8x64xf32>
    %30 = arith.mulf %21, %29 : vector<8x64xf32>
    %31 = vector.shape_cast %30 : vector<8x64xf32> to vector<8x1x64xf32>
    %32 = vector.broadcast %28 : vector<8x64x1xf32> to vector<8x64x64xf32>
    %33 = vector.broadcast %31 : vector<8x1x64xf32> to vector<8x64x64xf32>
    %34 = arith.mulf %32, %33 : vector<8x64x64xf32>
    %cst_31 = arith.constant dense<0xFF800000> : vector<8x64xf32>
    %35 = vector.multi_reduction <maximumf>, %34, %cst_31 [2] : vector<8x64x64xf32> to vector<8x64xf32>
    %36 = vector.shape_cast %35 : vector<8x64xf32> to vector<8x64x1xf32>
    %37 = vector.broadcast %36 : vector<8x64x1xf32> to vector<8x64x64xf32>
    %38 = arith.subf %34, %37 : vector<8x64x64xf32>
    %39 = math.exp %38 : vector<8x64x64xf32>
    %cst_32 = arith.constant dense<0.000000e+00> : vector<8x64xf32>
    %40 = vector.multi_reduction <add>, %39, %cst_32 [2] : vector<8x64x64xf32> to vector<8x64xf32>
    %41 = vector.shape_cast %40 : vector<8x64xf32> to vector<8x64x1xf32>
    %42 = vector.shape_cast %27 : vector<8x64xf32> to vector<8x64x1xf32>
    %43 = arith.divf %42, %41 : vector<8x64x1xf32>
    %44 = vector.broadcast %43 : vector<8x64x1xf32> to vector<8x64x64xf32>
    %45 = arith.mulf %44, %39 : vector<8x64x64xf32>
    %cst_33 = arith.constant dense<0.000000e+00> : vector<8x64xf32>
    %46 = vector.multi_reduction <add>, %45, %cst_33 [1] : vector<8x64x64xf32> to vector<8x64xf32>
    %c0_34 = arith.constant 0 : index
    %c0_35 = arith.constant 0 : index
    %47 = vector.load %arg12[%c0_34, %c0_35] : memref<64x32xf32, #tpu.memory_space<vmem>>, vector<64x32xf32>
    %cst_36 = arith.constant dense<0.000000e+00> : vector<8x32xf32>
    %48 = tpu.matmul %46, %47, %cst_36 {dimension_numbers = #tpu.dot_dimension_numbers<[1], [0], [0], [1], [0, 0, 1, 1], [], []>} : vector<8x64xf32>, vector<64x32xf32>, vector<8x32xf32> -> vector<8x32xf32>
    %c0_37 = arith.constant 0 : index
    %c0_38 = arith.constant 0 : index
    %49 = vector.load %arg13[%c0_37, %c0_38] : memref<1x32xf32, #tpu.memory_space<vmem>>, vector<1x32xf32>
    %50 = vector.broadcast %49 : vector<1x32xf32> to vector<8x32xf32>
    %51 = arith.addf %48, %50 : vector<8x32xf32>
    %cst_39 = arith.constant 0.000000e+00 : f32
    %52 = vector.broadcast %cst_39 : f32 to vector<8x32xf32>
    %53 = arith.maximumf %51, %52 : vector<8x32xf32>
    %c0_40 = arith.constant 0 : index
    %c0_41 = arith.constant 0 : index
    %54 = vector.load %arg14[%c0_40, %c0_41] : memref<32x128xf32, #tpu.memory_space<vmem>>, vector<32x128xf32>
    %cst_42 = arith.constant dense<0.000000e+00> : vector<8x128xf32>
    %55 = tpu.matmul %53, %54, %cst_42 {dimension_numbers = #tpu.dot_dimension_numbers<[1], [0], [0], [1], [0, 0, 1, 1], [], []>} : vector<8x32xf32>, vector<32x128xf32>, vector<8x128xf32> -> vector<8x128xf32>
    %c0_43 = arith.constant 0 : index
    %c0_44 = arith.constant 0 : index
    %56 = vector.load %arg15[%c0_43, %c0_44] : memref<1x128xf32, #tpu.memory_space<vmem>>, vector<1x128xf32>
    %57 = vector.broadcast %56 : vector<1x128xf32> to vector<8x128xf32>
    %58 = arith.addf %55, %57 : vector<8x128xf32>
    %c0_45 = arith.constant 0 : index
    %c0_46 = arith.constant 0 : index
    %59 = vector.load %arg16[%c0_45, %c0_46] : memref<64x32xf32, #tpu.memory_space<vmem>>, vector<64x32xf32>
    %cst_47 = arith.constant dense<0.000000e+00> : vector<8x32xf32>
    %60 = tpu.matmul %46, %59, %cst_47 {dimension_numbers = #tpu.dot_dimension_numbers<[1], [0], [0], [1], [0, 0, 1, 1], [], []>} : vector<8x64xf32>, vector<64x32xf32>, vector<8x32xf32> -> vector<8x32xf32>
    %c0_48 = arith.constant 0 : index
    %c0_49 = arith.constant 0 : index
    %61 = vector.load %arg17[%c0_48, %c0_49] : memref<1x32xf32, #tpu.memory_space<vmem>>, vector<1x32xf32>
    %62 = vector.broadcast %61 : vector<1x32xf32> to vector<8x32xf32>
    %63 = arith.addf %60, %62 : vector<8x32xf32>
    %cst_50 = arith.constant 0.000000e+00 : f32
    %64 = vector.broadcast %cst_50 : f32 to vector<8x32xf32>
    %65 = arith.maximumf %63, %64 : vector<8x32xf32>
    %c0_51 = arith.constant 0 : index
    %c0_52 = arith.constant 0 : index
    %66 = vector.load %arg18[%c0_51, %c0_52] : memref<1x32xf32, #tpu.memory_space<vmem>>, vector<1x32xf32>
    %67 = vector.broadcast %66 : vector<1x32xf32> to vector<8x32xf32>
    %68 = arith.mulf %65, %67 : vector<8x32xf32>
    %cst_53 = arith.constant dense<0.000000e+00> : vector<8xf32>
    %69 = vector.multi_reduction <add>, %68, %cst_53 [1] : vector<8x32xf32> to vector<8xf32>
    %70 = vector.shape_cast %69 : vector<8xf32> to vector<8x1xf32>
    %c0_54 = arith.constant 0 : index
    %c0_55 = arith.constant 0 : index
    %71 = vector.load %arg19[%c0_54, %c0_55] : memref<1x1xf32, #tpu.memory_space<vmem>>, vector<1x1xf32>
    %72 = vector.broadcast %71 : vector<1x1xf32> to vector<8x1xf32>
    %73 = arith.addf %70, %72 : vector<8x1xf32>
    %cst_56 = arith.constant dense<0.000000e+00> : vector<8xf32>
    %74 = vector.multi_reduction <add>, %58, %cst_56 [1] : vector<8x128xf32> to vector<8xf32>
    %75 = vector.shape_cast %74 : vector<8xf32> to vector<8x1xf32>
    %cst_57 = arith.constant 1.250000e-01 : f32
    %76 = vector.broadcast %cst_57 : f32 to vector<8x1xf32>
    %77 = arith.mulf %75, %76 : vector<8x1xf32>
    %78 = vector.broadcast %77 : vector<8x1xf32> to vector<8x128xf32>
    %79 = arith.subf %58, %78 : vector<8x128xf32>
    %80 = vector.broadcast %73 : vector<8x1xf32> to vector<8x128xf32>
    %81 = arith.addf %79, %80 : vector<8x128xf32>
    %c0_58 = arith.constant 0 : index
    %c0_59 = arith.constant 0 : index
    %82 = vector.load %arg20[%c0_58, %c0_59] : memref<8x128xf32, #tpu.memory_space<vmem>>, vector<8x128xf32>
    tpu.vector_store %arg20[%c0_58, %c0_59], %81 {strides = array<i32>} : memref<8x128xf32, #tpu.memory_space<vmem>>, vector<8x128xf32>,
    return
  }
  func.func @transform_0(%arg0: i32) -> (i32, i32) {
    %c0_i32 = arith.constant 0 : i32
    %c0_i32_0 = arith.constant 0 : i32
    return %arg0, %c0_i32 : i32, i32
  }
  func.func @transform_1(%arg0: i32) -> (i32, i32) {
    %c0_i32 = arith.constant 0 : i32
    %c0_i32_0 = arith.constant 0 : i32
    return %arg0, %c0_i32 : i32, i32
  }
  func.func @transform_2(%arg0: i32) -> (i32, i32) {
    %c0_i32 = arith.constant 0 : i32
    %c0_i32_0 = arith.constant 0 : i32
    %c0_i32_1 = arith.constant 0 : i32
    return %c0_i32, %c0_i32_0 : i32, i32
  }
  func.func @transform_3(%arg0: i32) -> (i32, i32) {
    %c0_i32 = arith.constant 0 : i32
    %c0_i32_0 = arith.constant 0 : i32
    %c0_i32_1 = arith.constant 0 : i32
    return %c0_i32, %c0_i32_0 : i32, i32
  }
  func.func @transform_4(%arg0: i32) -> (i32, i32) {
    %c0_i32 = arith.constant 0 : i32
    %c0_i32_0 = arith.constant 0 : i32
    %c0_i32_1 = arith.constant 0 : i32
    return %c0_i32, %c0_i32_0 : i32, i32
  }
  func.func @transform_5(%arg0: i32) -> (i32, i32) {
    %c0_i32 = arith.constant 0 : i32
    %c0_i32_0 = arith.constant 0 : i32
    %c0_i32_1 = arith.constant 0 : i32
    return %c0_i32, %c0_i32_0 : i32, i32
  }
  func.func @transform_6(%arg0: i32) -> (i32, i32) {
    %c0_i32 = arith.constant 0 : i32
    %c0_i32_0 = arith.constant 0 : i32
    %c0_i32_1 = arith.constant 0 : i32
    return %c0_i32, %c0_i32_0 : i32, i32
  }
  func.func @transform_7(%arg0: i32) -> (i32, i32) {
    %c0_i32 = arith.constant 0 : i32
    %c0_i32_0 = arith.constant 0 : i32
    %c0_i32_1 = arith.constant 0 : i32
    return %c0_i32, %c0_i32_0 : i32, i32
  }
  func.func @transform_8(%arg0: i32) -> (i32, i32) {
    %c0_i32 = arith.constant 0 : i32
    %c0_i32_0 = arith.constant 0 : i32
    %c0_i32_1 = arith.constant 0 : i32
    return %c0_i32, %c0_i32_0 : i32, i32
  }
  func.func @transform_9(%arg0: i32) -> (i32, i32) {
    %c0_i32 = arith.constant 0 : i32
    %c0_i32_0 = arith.constant 0 : i32
    %c0_i32_1 = arith.constant 0 : i32
    return %c0_i32, %c0_i32_0 : i32, i32
  }
  func.func @transform_10(%arg0: i32) -> (i32, i32) {
    %c0_i32 = arith.constant 0 : i32
    %c0_i32_0 = arith.constant 0 : i32
    %c0_i32_1 = arith.constant 0 : i32
    return %c0_i32, %c0_i32_0 : i32, i32
  }
  func.func @transform_11(%arg0: i32) -> (i32, i32) {
    %c0_i32 = arith.constant 0 : i32
    %c0_i32_0 = arith.constant 0 : i32
    %c0_i32_1 = arith.constant 0 : i32
    return %c0_i32, %c0_i32_0 : i32, i32
  }
  func.func @transform_12(%arg0: i32) -> (i32, i32) {
    %c0_i32 = arith.constant 0 : i32
    %c0_i32_0 = arith.constant 0 : i32
    %c0_i32_1 = arith.constant 0 : i32
    return %c0_i32, %c0_i32_0 : i32, i32
  }
  func.func @transform_13(%arg0: i32) -> (i32, i32) {
    %c0_i32 = arith.constant 0 : i32
    %c0_i32_0 = arith.constant 0 : i32
    %c0_i32_1 = arith.constant 0 : i32
    return %c0_i32, %c0_i32_0 : i32, i32
  }
  func.func @transform_14(%arg0: i32) -> (i32, i32) {
    %c0_i32 = arith.constant 0 : i32
    %c0_i32_0 = arith.constant 0 : i32
    %c0_i32_1 = arith.constant 0 : i32
    return %c0_i32, %c0_i32_0 : i32, i32
  }
  func.func @transform_15(%arg0: i32) -> (i32, i32) {
    %c0_i32 = arith.constant 0 : i32
    %c0_i32_0 = arith.constant 0 : i32
    %c0_i32_1 = arith.constant 0 : i32
    return %c0_i32, %c0_i32_0 : i32, i32
  }
  func.func @transform_16(%arg0: i32) -> (i32, i32) {
    %c0_i32 = arith.constant 0 : i32
    %c0_i32_0 = arith.constant 0 : i32
    %c0_i32_1 = arith.constant 0 : i32
    return %c0_i32, %c0_i32_0 : i32, i32
  }
  func.func @transform_17(%arg0: i32) -> (i32, i32) {
    %c0_i32 = arith.constant 0 : i32
    %c0_i32_0 = arith.constant 0 : i32
    %c0_i32_1 = arith.constant 0 : i32
    return %c0_i32, %c0_i32_0 : i32, i32
  }
  func.func @transform_18(%arg0: i32) -> (i32, i32) {
    %c0_i32 = arith.constant 0 : i32
    %c0_i32_0 = arith.constant 0 : i32
    %c0_i32_1 = arith.constant 0 : i32
    return %c0_i32, %c0_i32_0 : i32, i32
  }
  func.func @transform_19(%arg0: i32) -> (i32, i32) {
    %c0_i32 = arith.constant 0 : i32
    %c0_i32_0 = arith.constant 0 : i32
    return %arg0, %c0_i32 : i32, i32
  }
}

</mosaic_0001>

<llo_original>
// kernel: self_attention_forward.1
$region0: #{self_attention_forward.1}
  #allocation0 [shape = 'u32[]', space=smem, size = 0x4, offset = 0x4, fixed_abs, tag = 'smem constant byte address 0x4 - core index']
  #allocation1 [shape = 'u32[144,128]{1,0:T(1,128)}', space=vmem, size = 0x12000, scoped, tag = 'internal scratch']
  #allocation2 [shape = 'f32[1,1]{1,0:T(1,128)S(1)}', space=vmem, size = 0x200, scoped, tag = 'scoped memory for self_attention_forward.1']
  %s0 = inlined_call_operand.vmem [shape: f32[8,16], index: 0, kind: input, shape index: {}]
  %s1 = inlined_call_operand.vmem [shape: f32[24,16], index: 1, kind: input, shape index: {}]
  %s2 = inlined_call_operand.vmem [shape: f32[8,24], index: 2, kind: input, shape index: {}]
  %s3 = inlined_call_operand.vmem [shape: f32[16,128], index: 3, kind: input, shape index: {}]
  %s4 = inlined_call_operand.vmem [shape: f32[1,128], index: 4, kind: input, shape index: {}]
  %s5 = inlined_call_operand.vmem [shape: f32[128,64], index: 5, kind: input, shape index: {}]
  %s6 = inlined_call_operand.vmem [shape: f32[1,64], index: 6, kind: input, shape index: {}]
  %s7 = inlined_call_operand.vmem [shape: f32[16,128], index: 7, kind: input, shape index: {}]
  %s8 = inlined_call_operand.vmem [shape: f32[128,64], index: 8, kind: input, shape index: {}]
  %s9 = inlined_call_operand.vmem [shape: f32[16,128], index: 9, kind: input, shape index: {}]
  %s10 = inlined_call_operand.vmem [shape: f32[128,64], index: 10, kind: input, shape index: {}]
  %s11 = inlined_call_operand.vmem [shape: f32[64,32], index: 11, kind: input, shape index: {}]
  %s12 = inlined_call_operand.vmem [shape: f32[1,32], index: 12, kind: input, shape index: {}]
  %s13 = inlined_call_operand.vmem [shape: f32[32,128], index: 13, kind: input, shape index: {}]
  %s14 = inlined_call_operand.vmem [shape: f32[1,128], index: 14, kind: input, shape index: {}]
  %s15 = inlined_call_operand.vmem [shape: f32[64,32], index: 15, kind: input, shape index: {}]
  %s16 = inlined_call_operand.vmem [shape: f32[1,32], index: 16, kind: input, shape index: {}]
  %s17 = inlined_call_operand.vmem [shape: f32[1,32], index: 17, kind: input, shape index: {}]
  %s18 = inlined_call_operand.<no memory space> [shape: f32[1,1], index: 18, kind: input, shape index: {}]
  %s19 = inlined_call_operand.vmem [shape: f32[8,128], index: 19, kind: output, shape index: {}]
  %s20 = sld [smem:[#allocation0]]
  $region86: #{self_attention_forward.1} parent=0
    _
  %s22 = ssub.s32 1, %s20
  %s23 = scalar_select 0, %s22, %s20
  %v24 = vstv %s18
  %25 = vst [vmem:[#allocation2] sm:$0x1] %v24
  // Predicated region
  $region2: #{self_attention_forward.1} parent=0 // pred_check
    _
  $region3: #{self_attention_forward.1} parent=0 // pred_check_branch
    %27 = sbr.rel (0) target = $region5
  $region4: #{self_attention_forward.1} parent=0 // pred_region
    _
  $region5: #{self_attention_forward.1} parent=0 // pred_fallthru
    _
  // Predicated region
  $region6: #{self_attention_forward.1} parent=0 // pred_check
    _
  $region7: #{self_attention_forward.1} parent=0 // pred_check_branch
    %29 = sbr.rel (0) target = $region9
  $region8: #{self_attention_forward.1} parent=0 // pred_region
    _
  $region9: #{self_attention_forward.1} parent=0 // pred_fallthru
    _
  // Predicated region
  $region10: #{self_attention_forward.1} parent=0 // pred_check
    _
  $region11: #{self_attention_forward.1} parent=0 // pred_check_branch
    %31 = sbr.rel (0) target = $region13
  $region12: #{self_attention_forward.1} parent=0 // pred_region
    _
  $region13: #{self_attention_forward.1} parent=0 // pred_fallthru
    _
  // Predicated region
  $region14: #{self_attention_forward.1} parent=0 // pred_check
    _
  $region15: #{self_attention_forward.1} parent=0 // pred_check_branch
    %33 = sbr.rel (0) target = $region17
  $region16: #{self_attention_forward.1} parent=0 // pred_region
    _
  $region17: #{self_attention_forward.1} parent=0 // pred_fallthru
    _
  // Predicated region
  $region18: #{self_attention_forward.1} parent=0 // pred_check
    _
  $region19: #{self_attention_forward.1} parent=0 // pred_check_branch
    %35 = sbr.rel (0) target = $region21
  $region20: #{self_attention_forward.1} parent=0 // pred_region
    _
  $region21: #{self_attention_forward.1} parent=0 // pred_fallthru
    _
  // Predicated region
  $region22: #{self_attention_forward.1} parent=0 // pred_check
    _
  $region23: #{self_attention_forward.1} parent=0 // pred_check_branch
    %37 = sbr.rel (0) target = $region25
  $region24: #{self_attention_forward.1} parent=0 // pred_region
    _
  $region25: #{self_attention_forward.1} parent=0 // pred_fallthru
    _
  // Predicated region
  $region26: #{self_attention_forward.1} parent=0 // pred_check
    _
  $region27: #{self_attention_forward.1} parent=0 // pred_check_branch
    %39 = sbr.rel (0) target = $region29
  $region28: #{self_attention_forward.1} parent=0 // pred_region
    _
  $region29: #{self_attention_forward.1} parent=0 // pred_fallthru
    _
  // Predicated region
  $region30: #{self_attention_forward.1} parent=0 // pred_check
    _
  $region31: #{self_attention_forward.1} parent=0 // pred_check_branch
    %41 = sbr.rel (0) target = $region33
  $region32: #{self_attention_forward.1} parent=0 // pred_region
    _
  $region33: #{self_attention_forward.1} parent=0 // pred_fallthru
    _
  // Predicated region
  $region34: #{self_attention_forward.1} parent=0 // pred_check
    _
  $region35: #{self_attention_forward.1} parent=0 // pred_check_branch
    %43 = sbr.rel (0) target = $region37
  $region36: #{self_attention_forward.1} parent=0 // pred_region
    _
  $region37: #{self_attention_forward.1} parent=0 // pred_fallthru
    _
  // Predicated region
  $region38: #{self_attention_forward.1} parent=0 // pred_check
    _
  $region39: #{self_attention_forward.1} parent=0 // pred_check_branch
    %45 = sbr.rel (0) target = $region41
  $region40: #{self_attention_forward.1} parent=0 // pred_region
    _
  $region41: #{self_attention_forward.1} parent=0 // pred_fallthru
    _
  // Predicated region
  $region42: #{self_attention_forward.1} parent=0 // pred_check
    _
  $region43: #{self_attention_forward.1} parent=0 // pred_check_branch
    %47 = sbr.rel (0) target = $region45
  $region44: #{self_attention_forward.1} parent=0 // pred_region
    _
  $region45: #{self_attention_forward.1} parent=0 // pred_fallthru
    _
  // Predicated region
  $region46: #{self_attention_forward.1} parent=0 // pred_check
    _
  $region47: #{self_attention_forward.1} parent=0 // pred_check_branch
    %49 = sbr.rel (0) target = $region49
  $region48: #{self_attention_forward.1} parent=0 // pred_region
    _
  $region49: #{self_attention_forward.1} parent=0 // pred_fallthru
    _
  // Predicated region
  $region50: #{self_attention_forward.1} parent=0 // pred_check
    _
  $region51: #{self_attention_forward.1} parent=0 // pred_check_branch
    %51 = sbr.rel (0) target = $region53
  $region52: #{self_attention_forward.1} parent=0 // pred_region
    _
  $region53: #{self_attention_forward.1} parent=0 // pred_fallthru
    _
  // Predicated region
  $region54: #{self_attention_forward.1} parent=0 // pred_check
    _
  $region55: #{self_attention_forward.1} parent=0 // pred_check_branch
    %53 = sbr.rel (0) target = $region57
  $region56: #{self_attention_forward.1} parent=0 // pred_region
    _
  $region57: #{self_attention_forward.1} parent=0 // pred_fallthru
    _
  // Predicated region
  $region58: #{self_attention_forward.1} parent=0 // pred_check
    _
  $region59: #{self_attention_forward.1} parent=0 // pred_check_branch
    %55 = sbr.rel (0) target = $region61
  $region60: #{self_attention_forward.1} parent=0 // pred_region
    _
  $region61: #{self_attention_forward.1} parent=0 // pred_fallthru
    _
  // Predicated region
  $region62: #{self_attention_forward.1} parent=0 // pred_check
    _
  $region63: #{self_attention_forward.1} parent=0 // pred_check_branch
    %57 = sbr.rel (0) target = $region65
  $region64: #{self_attention_forward.1} parent=0 // pred_region
    _
  $region65: #{self_attention_forward.1} parent=0 // pred_fallthru
    _
  // Predicated region
  $region66: #{self_attention_forward.1} parent=0 // pred_check
    _
  $region67: #{self_attention_forward.1} parent=0 // pred_check_branch
    %59 = sbr.rel (0) target = $region69
  $region68: #{self_attention_forward.1} parent=0 // pred_region
    _
  $region69: #{self_attention_forward.1} parent=0 // pred_fallthru
    _
  // Predicated region
  $region70: #{self_attention_forward.1} parent=0 // pred_check
    _
  $region71: #{self_attention_forward.1} parent=0 // pred_check_branch
    %61 = sbr.rel (0) target = $region73
  $region72: #{self_attention_forward.1} parent=0 // pred_region
    _
  $region73: #{self_attention_forward.1} parent=0 // pred_fallthru
    _
  // Predicated region
  $region74: #{self_attention_forward.1} parent=0 // pred_check
    _
  $region75: #{self_attention_forward.1} parent=0 // pred_check_branch
    %63 = sbr.rel (0) target = $region77
  $region76: #{self_attention_forward.1} parent=0 // pred_region
    _
  $region77: #{self_attention_forward.1} parent=0 // pred_fallthru
    _
  %v64 = vld [vmem:[%s0] sm:$0xff]
  %v65 = vld [vmem:[%s1] sm:$0xff]
  %v66 = vld [vmem:[%s1 + $0x8] sm:$0xff]
  %v67 = vld [vmem:[%s1 + $0x10] sm:$0xff]
  %v68 = vld [vmem:[%s3] sm:$0xff]
  %v69 = vld [vmem:[%s3 + $0x8] sm:$0xff]
  %v70 = vld [vmem:[%s4] sm:$0x1]
  %v72 = vlaneseq
  %v73 = vshrl.u32 %v72, 7
  %v74 = vsub.s32 0, %v73
  %v75 = vrot.slane %v70, %v74
  %vm77 = vcmask 130048
  %v79 = vsel %vm77, %v65, 0
  %v82 = vsel %vm77, %v66, 0
  %v85 = vsel %vm77, %v67, 0
  %87 = vmatprep.subr.mxu0 0.0
  %88 = vmatpush1.msra.mxu0 %v68
  %89 = vmatprep.subr.mxu0 0.0
  %90 = vmatpush1.msra.mxu0 %v69
  %91 = vmatprep.subr.mxu0 0.0
  %92 = vmatpush1.msra.mxu0 0.0
  %93 = vmatprep.subr.mxu0 0.0
  %94 = vmatpush1.msra.mxu0 0.0
  %95 = vmatprep.subr.mxu0 0.0
  %96 = vmatpush1.msra.mxu0 0.0
  %97 = vmatprep.subr.mxu0 0.0
  %98 = vmatpush1.msra.mxu0 0.0
  %99 = vmatprep.subr.mxu0 0.0
  %100 = vmatpush1.msra.mxu0 0.0
  %101 = vmatprep.subr.mxu0 0.0
  %102 = vmatpush1.msra.mxu0 0.0
  %103 = vmatprep.subr.mxu0 0.0
  %104 = vmatpush1.msra.mxu0 0.0
  %105 = vmatprep.subr.mxu0 0.0
  %106 = vmatpush1.msra.mxu0 0.0
  %107 = vmatprep.subr.mxu0 0.0
  %108 = vmatpush1.msra.mxu0 0.0
  %109 = vmatprep.subr.mxu0 0.0
  %110 = vmatpush1.msra.mxu0 0.0
  %111 = vmatprep.subr.mxu0 0.0
  %112 = vmatpush1.msra.mxu0 0.0
  %113 = vmatprep.subr.mxu0 0.0
  %114 = vmatpush1.msra.mxu0 0.0
  %115 = vmatprep.subr.mxu0 0.0
  %116 = vmatpush1.msra.mxu0 0.0
  %117 = vmatprep.subr.mxu0 0.0
  %118 = vmatpush1.msra.mxu0 0.0
  %119 = vmatprep.subr.mxu0 0.0
  %120 = vmatpush1.msra.mxu0 0.0
  %121 = vmatprep.subr.mxu0 0.0
  %122 = vmatpush1.msra.mxu0 0.0
  %123 = vmatprep.subr.mxu0 0.0
  %124 = vmatpush1.msra.mxu0 0.0
  %125 = vmatprep.subr.mxu0 0.0
  %126 = vmatpush1.msra.mxu0 0.0
  %127 = vmatprep.subr.mxu0 0.0
  %128 = vmatpush1.msra.mxu0 0.0
  %129 = vmatprep.subr.mxu0 0.0
  %130 = vmatpush1.msra.mxu0 0.0
  %131 = vmatprep.subr.mxu0 0.0
  %132 = vmatpush1.msra.mxu0 0.0
  %133 = vmatprep.subr.mxu0 0.0
  %134 = vmatpush1.msra.mxu0 0.0
  %135 = vmatprep.subr.mxu0 0.0
  %136 = vmatpush1.msra.mxu0 0.0
  %137 = vmatprep.subr.mxu0 0.0
  %138 = vmatpush1.msra.mxu0 0.0
  %139 = vmatprep.subr.mxu0 0.0
  %140 = vmatpush1.msra.mxu0 0.0
  %141 = vmatprep.subr.mxu0 0.0
  %142 = vmatpush1.msra.mxu0 0.0
  %143 = vmatprep.subr.mxu0 0.0
  %144 = vmatpush1.msra.mxu0 0.0
  %145 = vmatprep.subr.mxu0 0.0
  %146 = vmatpush1.msra.mxu0 0.0
  %147 = vmatprep.subr.mxu0 0.0
  %148 = vmatpush1.msra.mxu0 0.0
  %149 = vmatprep.subr.mxu0 0.0
  %150 = vmatpush1.msra.mxu0 0.0
  %151 = vmatprep.mubr.f32.mxu0 0.0
  %152 = vmatmul.mubr.f32.gmra.mrb[0].mxu0 %v79
  %v153 = vpop.f32.mrb[0].mxu0
  %v154 = vadd.f32 %v75, %v153
  %v155 = vpop.f32.mrb[0].mxu0
  %156 = vmatprep.mubr.f32.mxu0 0.0
  %157 = vmatmul.mubr.f32.gmra.mrb[0].mxu0 %v82
  %v158 = vpop.f32.mrb[0].mxu0
  %v159 = vadd.f32 %v75, %v158
  %v160 = vpop.f32.mrb[0].mxu0
  %161 = vmatprep.mubr.f32.mxu0 0.0
  %162 = vmatmul.mubr.f32.gmra.mrb[0].mxu0 %v85
  %v163 = vpop.f32.mrb[0].mxu0
  %v164 = vadd.f32 %v75, %v163
  %v165 = vpop.f32.mrb[0].mxu0
  %166 = vdwg.mxu0
  %v167 = vmax.f32 %v154, 0.0
  %v168 = vmax.f32 %v159, 0.0
  %v169 = vmax.f32 %v164, 0.0
  %v170 = vld [vmem:[%s2] sm:$0xff]
  %vm171 = vcmask 195584
  %v173 = vsel %vm171, %v170, 0
  %175 = vmatprep.subr.mxu0 0.0
  %176 = vmatpush1.msra.mxu0 %v167
  %177 = vmatprep.subr.mxu0 0.0
  %178 = vmatpush1.msra.mxu0 %v168
  %179 = vmatprep.subr.mxu0 0.0
  %180 = vmatpush1.msra.mxu0 %v169
  %181 = vmatprep.subr.mxu0 0.0
  %182 = vmatpush1.msra.mxu0 0.0
  %183 = vmatprep.subr.mxu0 0.0
  %184 = vmatpush1.msra.mxu0 0.0
  %185 = vmatprep.subr.mxu0 0.0
  %186 = vmatpush1.msra.mxu0 0.0
  %187 = vmatprep.subr.mxu0 0.0
  %188 = vmatpush1.msra.mxu0 0.0
  %189 = vmatprep.subr.mxu0 0.0
  %190 = vmatpush1.msra.mxu0 0.0
  %191 = vmatprep.subr.mxu0 0.0
  %192 = vmatpush1.msra.mxu0 0.0
  %193 = vmatprep.subr.mxu0 0.0
  %194 = vmatpush1.msra.mxu0 0.0
  %195 = vmatprep.subr.mxu0 0.0
  %196 = vmatpush1.msra.mxu0 0.0
  %197 = vmatprep.subr.mxu0 0.0
  %198 = vmatpush1.msra.mxu0 0.0
  %199 = vmatprep.subr.mxu0 0.0
  %200 = vmatpush1.msra.mxu0 0.0
  %201 = vmatprep.subr.mxu0 0.0
  %202 = vmatpush1.msra.mxu0 0.0
  %203 = vmatprep.subr.mxu0 0.0
  %204 = vmatpush1.msra.mxu0 0.0
  %205 = vmatprep.subr.mxu0 0.0
  %206 = vmatpush1.msra.mxu0 0.0
  %207 = vmatprep.subr.mxu0 0.0
  %208 = vmatpush1.msra.mxu0 0.0
  %209 = vmatprep.subr.mxu0 0.0
  %210 = vmatpush1.msra.mxu0 0.0
  %211 = vmatprep.subr.mxu0 0.0
  %212 = vmatpush1.msra.mxu0 0.0
  %213 = vmatprep.subr.mxu0 0.0
  %214 = vmatpush1.msra.mxu0 0.0
  %215 = vmatprep.subr.mxu0 0.0
  %216 = vmatpush1.msra.mxu0 0.0
  %217 = vmatprep.subr.mxu0 0.0
  %218 = vmatpush1.msra.mxu0 0.0
  %219 = vmatprep.subr.mxu0 0.0
  %220 = vmatpush1.msra.mxu0 0.0
  %221 = vmatprep.subr.mxu0 0.0
  %222 = vmatpush1.msra.mxu0 0.0
  %223 = vmatprep.subr.mxu0 0.0
  %224 = vmatpush1.msra.mxu0 0.0
  %225 = vmatprep.subr.mxu0 0.0
  %226 = vmatpush1.msra.mxu0 0.0
  %227 = vmatprep.subr.mxu0 0.0
  %228 = vmatpush1.msra.mxu0 0.0
  %229 = vmatprep.subr.mxu0 0.0
  %230 = vmatpush1.msra.mxu0 0.0
  %231 = vmatprep.subr.mxu0 0.0
  %232 = vmatpush1.msra.mxu0 0.0
  %233 = vmatprep.subr.mxu0 0.0
  %234 = vmatpush1.msra.mxu0 0.0
  %235 = vmatprep.subr.mxu0 0.0
  %236 = vmatpush1.msra.mxu0 0.0
  %237 = vmatprep.subr.mxu0 0.0
  %238 = vmatpush1.msra.mxu0 0.0
  %239 = vmatprep.mubr.f32.mxu0 0.0
  %240 = vmatmul.mubr.f32.gmra.mrb[0].mxu0 %v173
  %v241 = vpop.f32.mrb[0].mxu0
  %v242 = vadd.f32 0.0, %v241
  %v243 = vpop.f32.mrb[0].mxu0
  %244 = vdwg.mxu0
  %v245 = vld [vmem:[%s5] sm:$0xff]
  %v246 = vld [vmem:[%s5 + $0x8] sm:$0xff]
  %v247 = vld [vmem:[%s5 + $0x10] sm:$0xff]
  %v248 = vld [vmem:[%s5 + $0x18] sm:$0xff]
  %v249 = vld [vmem:[%s5 + $0x20] sm:$0xff]
  %v250 = vld [vmem:[%s5 + $0x28] sm:$0xff]
  %v251 = vld [vmem:[%s5 + $0x30] sm:$0xff]
  %v252 = vld [vmem:[%s5 + $0x38] sm:$0xff]
  %v253 = vld [vmem:[%s5 + $0x40] sm:$0xff]
  %v254 = vld [vmem:[%s5 + $0x48] sm:$0xff]
  %v255 = vld [vmem:[%s5 + $0x50] sm:$0xff]
  %v256 = vld [vmem:[%s5 + $0x58] sm:$0xff]
  %v257 = vld [vmem:[%s5 + $0x60] sm:$0xff]
  %v258 = vld [vmem:[%s5 + $0x68] sm:$0xff]
  %v259 = vld [vmem:[%s5 + $0x70] sm:$0xff]
  %v260 = vld [vmem:[%s5 + $0x78] sm:$0xff]
  %v261 = vld [vmem:[%s6] sm:$0x1]
  %v263 = vlaneseq
  %v264 = vshrl.u32 %v263, 7
  %v265 = vsub.s32 0, %v264
  %v266 = vrot.slane %v261, %v265
  %268 = vmatprep.subr.mxu0 0.0
  %269 = vmatpush1.msra.mxu0 %v245
  %270 = vmatprep.subr.mxu0 0.0
  %271 = vmatpush1.msra.mxu0 %v246
  %272 = vmatprep.subr.mxu0 0.0
  %273 = vmatpush1.msra.mxu0 %v247
  %274 = vmatprep.subr.mxu0 0.0
  %275 = vmatpush1.msra.mxu0 %v248
  %276 = vmatprep.subr.mxu0 0.0
  %277 = vmatpush1.msra.mxu0 %v249
  %278 = vmatprep.subr.mxu0 0.0
  %279 = vmatpush1.msra.mxu0 %v250
  %280 = vmatprep.subr.mxu0 0.0
  %281 = vmatpush1.msra.mxu0 %v251
  %282 = vmatprep.subr.mxu0 0.0
  %283 = vmatpush1.msra.mxu0 %v252
  %284 = vmatprep.subr.mxu0 0.0
  %285 = vmatpush1.msra.mxu0 %v253
  %286 = vmatprep.subr.mxu0 0.0
  %287 = vmatpush1.msra.mxu0 %v254
  %288 = vmatprep.subr.mxu0 0.0
  %289 = vmatpush1.msra.mxu0 %v255
  %290 = vmatprep.subr.mxu0 0.0
  %291 = vmatpush1.msra.mxu0 %v256
  %292 = vmatprep.subr.mxu0 0.0
  %293 = vmatpush1.msra.mxu0 %v257
  %294 = vmatprep.subr.mxu0 0.0
  %295 = vmatpush1.msra.mxu0 %v258
  %296 = vmatprep.subr.mxu0 0.0
  %297 = vmatpush1.msra.mxu0 %v259
  %298 = vmatprep.subr.mxu0 0.0
  %299 = vmatpush1.msra.mxu0 %v260
  %300 = vmatprep.subr.mxu0 0.0
  %301 = vmatpush1.msra.mxu0 0.0
  %302 = vmatprep.subr.mxu0 0.0
  %303 = vmatpush1.msra.mxu0 0.0
  %304 = vmatprep.subr.mxu0 0.0
  %305 = vmatpush1.msra.mxu0 0.0
  %306 = vmatprep.subr.mxu0 0.0
  %307 = vmatpush1.msra.mxu0 0.0
  %308 = vmatprep.subr.mxu0 0.0
  %309 = vmatpush1.msra.mxu0 0.0
  %310 = vmatprep.subr.mxu0 0.0
  %311 = vmatpush1.msra.mxu0 0.0
  %312 = vmatprep.subr.mxu0 0.0
  %313 = vmatpush1.msra.mxu0 0.0
  %314 = vmatprep.subr.mxu0 0.0
  %315 = vmatpush1.msra.mxu0 0.0
  %316 = vmatprep.subr.mxu0 0.0
  %317 = vmatpush1.msra.mxu0 0.0
  %318 = vmatprep.subr.mxu0 0.0
  %319 = vmatpush1.msra.mxu0 0.0
  %320 = vmatprep.subr.mxu0 0.0
  %321 = vmatpush1.msra.mxu0 0.0
  %322 = vmatprep.subr.mxu0 0.0
  %323 = vmatpush1.msra.mxu0 0.0
  %324 = vmatprep.subr.mxu0 0.0
  %325 = vmatpush1.msra.mxu0 0.0
  %326 = vmatprep.subr.mxu0 0.0
  %327 = vmatpush1.msra.mxu0 0.0
  %328 = vmatprep.subr.mxu0 0.0
  %329 = vmatpush1.msra.mxu0 0.0
  %330 = vmatprep.subr.mxu0 0.0
  %331 = vmatpush1.msra.mxu0 0.0
  %332 = vmatprep.mubr.f32.mxu0 0.0
  %333 = vmatmul.mubr.f32.gmra.mrb[0].mxu0 %v242
  %v334 = vpop.f32.mrb[0].mxu0
  %v335 = vadd.f32 %v266, %v334
  %v336 = vpop.f32.mrb[0].mxu0
  %337 = vdwg.mxu0
  %v338 = vld [vmem:[%s7] sm:$0xff]
  %v339 = vld [vmem:[%s7 + $0x8] sm:$0xff]
  %v341 = vsel %vm77, %v64, 0
  %343 = vmatprep.subr.mxu0 0.0
  %344 = vmatpush1.msra.mxu0 %v338
  %345 = vmatprep.subr.mxu0 0.0
  %346 = vmatpush1.msra.mxu0 %v339
  %347 = vmatprep.subr.mxu0 0.0
  %348 = vmatpush1.msra.mxu0 0.0
  %349 = vmatprep.subr.mxu0 0.0
  %350 = vmatpush1.msra.mxu0 0.0
  %351 = vmatprep.subr.mxu0 0.0
  %352 = vmatpush1.msra.mxu0 0.0
  %353 = vmatprep.subr.mxu0 0.0
  %354 = vmatpush1.msra.mxu0 0.0
  %355 = vmatprep.subr.mxu0 0.0
  %356 = vmatpush1.msra.mxu0 0.0
  %357 = vmatprep.subr.mxu0 0.0
  %358 = vmatpush1.msra.mxu0 0.0
  %359 = vmatprep.subr.mxu0 0.0
  %360 = vmatpush1.msra.mxu0 0.0
  %361 = vmatprep.subr.mxu0 0.0
  %362 = vmatpush1.msra.mxu0 0.0
  %363 = vmatprep.subr.mxu0 0.0
  %364 = vmatpush1.msra.mxu0 0.0
  %365 = vmatprep.subr.mxu0 0.0
  %366 = vmatpush1.msra.mxu0 0.0
  %367 = vmatprep.subr.mxu0 0.0
  %368 = vmatpush1.msra.mxu0 0.0
  %369 = vmatprep.subr.mxu0 0.0
  %370 = vmatpush1.msra.mxu0 0.0
  %371 = vmatprep.subr.mxu0 0.0
  %372 = vmatpush1.msra.mxu0 0.0
  %373 = vmatprep.subr.mxu0 0.0
  %374 = vmatpush1.msra.mxu0 0.0
  %375 = vmatprep.subr.mxu0 0.0
  %376 = vmatpush1.msra.mxu0 0.0
  %377 = vmatprep.subr.mxu0 0.0
  %378 = vmatpush1.msra.mxu0 0.0
  %379 = vmatprep.subr.mxu0 0.0
  %380 = vmatpush1.msra.mxu0 0.0
  %381 = vmatprep.subr.mxu0 0.0
  %382 = vmatpush1.msra.mxu0 0.0
  %383 = vmatprep.subr.mxu0 0.0
  %384 = vmatpush1.msra.mxu0 0.0
  %385 = vmatprep.subr.mxu0 0.0
  %386 = vmatpush1.msra.mxu0 0.0
  %387 = vmatprep.subr.mxu0 0.0
  %388 = vmatpush1.msra.mxu0 0.0
  %389 = vmatprep.subr.mxu0 0.0
  %390 = vmatpush1.msra.mxu0 0.0
  %391 = vmatprep.subr.mxu0 0.0
  %392 = vmatpush1.msra.mxu0 0.0
  %393 = vmatprep.subr.mxu0 0.0
  %394 = vmatpush1.msra.mxu0 0.0
  %395 = vmatprep.subr.mxu0 0.0
  %396 = vmatpush1.msra.mxu0 0.0
  %397 = vmatprep.subr.mxu0 0.0
  %398 = vmatpush1.msra.mxu0 0.0
  %399 = vmatprep.subr.mxu0 0.0
  %400 = vmatpush1.msra.mxu0 0.0
  %401 = vmatprep.subr.mxu0 0.0
  %402 = vmatpush1.msra.mxu0 0.0
  %403 = vmatprep.subr.mxu0 0.0
  %404 = vmatpush1.msra.mxu0 0.0
  %405 = vmatprep.subr.mxu0 0.0
  %406 = vmatpush1.msra.mxu0 0.0
  %407 = vmatprep.mubr.f32.mxu0 0.0
  %408 = vmatmul.mubr.f32.gmra.mrb[0].mxu0 %v341
  %v409 = vpop.f32.mrb[0].mxu0
  %v410 = vadd.f32 0.0, %v409
  %v411 = vpop.f32.mrb[0].mxu0
  %412 = vdwg.mxu0
  %v413 = vmax.f32 %v410, 0.0
  %v414 = vld [vmem:[%s8] sm:$0xff]
  %v415 = vld [vmem:[%s8 + $0x8] sm:$0xff]
  %v416 = vld [vmem:[%s8 + $0x10] sm:$0xff]
  %v417 = vld [vmem:[%s8 + $0x18] sm:$0xff]
  %v418 = vld [vmem:[%s8 + $0x20] sm:$0xff]
  %v419 = vld [vmem:[%s8 + $0x28] sm:$0xff]
  %v420 = vld [vmem:[%s8 + $0x30] sm:$0xff]
  %v421 = vld [vmem:[%s8 + $0x38] sm:$0xff]
  %v422 = vld [vmem:[%s8 + $0x40] sm:$0xff]
  %v423 = vld [vmem:[%s8 + $0x48] sm:$0xff]
  %v424 = vld [vmem:[%s8 + $0x50] sm:$0xff]
  %v425 = vld [vmem:[%s8 + $0x58] sm:$0xff]
  %v426 = vld [vmem:[%s8 + $0x60] sm:$0xff]
  %v427 = vld [vmem:[%s8 + $0x68] sm:$0xff]
  %v428 = vld [vmem:[%s8 + $0x70] sm:$0xff]
  %v429 = vld [vmem:[%s8 + $0x78] sm:$0xff]
  %430 = vmatprep.subr.mxu0 0.0
  %431 = vmatpush1.msra.mxu0 %v414
  %432 = vmatprep.subr.mxu0 0.0
  %433 = vmatpush1.msra.mxu0 %v415
  %434 = vmatprep.subr.mxu0 0.0
  %435 = vmatpush1.msra.mxu0 %v416
  %436 = vmatprep.subr.mxu0 0.0
  %437 = vmatpush1.msra.mxu0 %v417
  %438 = vmatprep.subr.mxu0 0.0
  %439 = vmatpush1.msra.mxu0 %v418
  %440 = vmatprep.subr.mxu0 0.0
  %441 = vmatpush1.msra.mxu0 %v419
  %442 = vmatprep.subr.mxu0 0.0
  %443 = vmatpush1.msra.mxu0 %v420
  %444 = vmatprep.subr.mxu0 0.0
  %445 = vmatpush1.msra.mxu0 %v421
  %446 = vmatprep.subr.mxu0 0.0
  %447 = vmatpush1.msra.mxu0 %v422
  %448 = vmatprep.subr.mxu0 0.0
  %449 = vmatpush1.msra.mxu0 %v423
  %450 = vmatprep.subr.mxu0 0.0
  %451 = vmatpush1.msra.mxu0 %v424
  %452 = vmatprep.subr.mxu0 0.0
  %453 = vmatpush1.msra.mxu0 %v425
  %454 = vmatprep.subr.mxu0 0.0
  %455 = vmatpush1.msra.mxu0 %v426
  %456 = vmatprep.subr.mxu0 0.0
  %457 = vmatpush1.msra.mxu0 %v427
  %458 = vmatprep.subr.mxu0 0.0
  %459 = vmatpush1.msra.mxu0 %v428
  %460 = vmatprep.subr.mxu0 0.0
  %461 = vmatpush1.msra.mxu0 %v429
  %462 = vmatprep.subr.mxu0 0.0
  %463 = vmatpush1.msra.mxu0 0.0
  %464 = vmatprep.subr.mxu0 0.0
  %465 = vmatpush1.msra.mxu0 0.0
  %466 = vmatprep.subr.mxu0 0.0
  %467 = vmatpush1.msra.mxu0 0.0
  %468 = vmatprep.subr.mxu0 0.0
  %469 = vmatpush1.msra.mxu0 0.0
  %470 = vmatprep.subr.mxu0 0.0
  %471 = vmatpush1.msra.mxu0 0.0
  %472 = vmatprep.subr.mxu0 0.0
  %473 = vmatpush1.msra.mxu0 0.0
  %474 = vmatprep.subr.mxu0 0.0
  %475 = vmatpush1.msra.mxu0 0.0
  %476 = vmatprep.subr.mxu0 0.0
  %477 = vmatpush1.msra.mxu0 0.0
  %478 = vmatprep.subr.mxu0 0.0
  %479 = vmatpush1.msra.mxu0 0.0
  %480 = vmatprep.subr.mxu0 0.0
  %481 = vmatpush1.msra.mxu0 0.0
  %482 = vmatprep.subr.mxu0 0.0
  %483 = vmatpush1.msra.mxu0 0.0
  %484 = vmatprep.subr.mxu0 0.0
  %485 = vmatpush1.msra.mxu0 0.0
  %486 = vmatprep.subr.mxu0 0.0
  %487 = vmatpush1.msra.mxu0 0.0
  %488 = vmatprep.subr.mxu0 0.0
  %489 = vmatpush1.msra.mxu0 0.0
  %490 = vmatprep.subr.mxu0 0.0
  %491 = vmatpush1.msra.mxu0 0.0
  %492 = vmatprep.subr.mxu0 0.0
  %493 = vmatpush1.msra.mxu0 0.0
  %494 = vmatprep.mubr.f32.mxu0 0.0
  %495 = vmatmul.mubr.f32.gmra.mrb[0].mxu0 %v413
  %v496 = vpop.f32.mrb[0].mxu0
  %v497 = vadd.f32 0.0, %v496
  %v498 = vpop.f32.mrb[0].mxu0
  %499 = vdwg.mxu0
  %v500 = vld [vmem:[%s9] sm:$0xff]
  %v501 = vld [vmem:[%s9 + $0x8] sm:$0xff]
  %502 = vmatprep.subr.mxu0 0.0
  %503 = vmatpush1.msra.mxu0 %v500
  %504 = vmatprep.subr.mxu0 0.0
  %505 = vmatpush1.msra.mxu0 %v501
  %506 = vmatprep.subr.mxu0 0.0
  %507 = vmatpush1.msra.mxu0 0.0
  %508 = vmatprep.subr.mxu0 0.0
  %509 = vmatpush1.msra.mxu0 0.0
  %510 = vmatprep.subr.mxu0 0.0
  %511 = vmatpush1.msra.mxu0 0.0
  %512 = vmatprep.subr.mxu0 0.0
  %513 = vmatpush1.msra.mxu0 0.0
  %514 = vmatprep.subr.mxu0 0.0
  %515 = vmatpush1.msra.mxu0 0.0
  %516 = vmatprep.subr.mxu0 0.0
  %517 = vmatpush1.msra.mxu0 0.0
  %518 = vmatprep.subr.mxu0 0.0
  %519 = vmatpush1.msra.mxu0 0.0
  %520 = vmatprep.subr.mxu0 0.0
  %521 = vmatpush1.msra.mxu0 0.0
  %522 = vmatprep.subr.mxu0 0.0
  %523 = vmatpush1.msra.mxu0 0.0
  %524 = vmatprep.subr.mxu0 0.0
  %525 = vmatpush1.msra.mxu0 0.0
  %526 = vmatprep.subr.mxu0 0.0
  %527 = vmatpush1.msra.mxu0 0.0
  %528 = vmatprep.subr.mxu0 0.0
  %529 = vmatpush1.msra.mxu0 0.0
  %530 = vmatprep.subr.mxu0 0.0
  %531 = vmatpush1.msra.mxu0 0.0
  %532 = vmatprep.subr.mxu0 0.0
  %533 = vmatpush1.msra.mxu0 0.0
  %534 = vmatprep.subr.mxu0 0.0
  %535 = vmatpush1.msra.mxu0 0.0
  %536 = vmatprep.subr.mxu0 0.0
  %537 = vmatpush1.msra.mxu0 0.0
  %538 = vmatprep.subr.mxu0 0.0
  %539 = vmatpush1.msra.mxu0 0.0
  %540 = vmatprep.subr.mxu0 0.0
  %541 = vmatpush1.msra.mxu0 0.0
  %542 = vmatprep.subr.mxu0 0.0
  %543 = vmatpush1.msra.mxu0 0.0
  %544 = vmatprep.subr.mxu0 0.0
  %545 = vmatpush1.msra.mxu0 0.0
  %546 = vmatprep.subr.mxu0 0.0
  %547 = vmatpush1.msra.mxu0 0.0
  %548 = vmatprep.subr.mxu0 0.0
  %549 = vmatpush1.msra.mxu0 0.0
  %550 = vmatprep.subr.mxu0 0.0
  %551 = vmatpush1.msra.mxu0 0.0
  %552 = vmatprep.subr.mxu0 0.0
  %553 = vmatpush1.msra.mxu0 0.0
  %554 = vmatprep.subr.mxu0 0.0
  %555 = vmatpush1.msra.mxu0 0.0
  %556 = vmatprep.subr.mxu0 0.0
  %557 = vmatpush1.msra.mxu0 0.0
  %558 = vmatprep.subr.mxu0 0.0
  %559 = vmatpush1.msra.mxu0 0.0
  %560 = vmatprep.subr.mxu0 0.0
  %561 = vmatpush1.msra.mxu0 0.0
  %562 = vmatprep.subr.mxu0 0.0
  %563 = vmatpush1.msra.mxu0 0.0
  %564 = vmatprep.subr.mxu0 0.0
  %565 = vmatpush1.msra.mxu0 0.0
  %566 = vmatprep.mubr.f32.mxu0 0.0
  %567 = vmatmul.mubr.f32.gmra.mrb[0].mxu0 %v341
  %v568 = vpop.f32.mrb[0].mxu0
  %v569 = vadd.f32 0.0, %v568
  %v570 = vpop.f32.mrb[0].mxu0
  %571 = vdwg.mxu0
  %v572 = vmax.f32 %v569, 0.0
  %v573 = vld [vmem:[%s10] sm:$0xff]
  %v574 = vld [vmem:[%s10 + $0x8] sm:$0xff]
  %v575 = vld [vmem:[%s10 + $0x10] sm:$0xff]
  %v576 = vld [vmem:[%s10 + $0x18] sm:$0xff]
  %v577 = vld [vmem:[%s10 + $0x20] sm:$0xff]
  %v578 = vld [vmem:[%s10 + $0x28] sm:$0xff]
  %v579 = vld [vmem:[%s10 + $0x30] sm:$0xff]
  %v580 = vld [vmem:[%s10 + $0x38] sm:$0xff]
  %v581 = vld [vmem:[%s10 + $0x40] sm:$0xff]
  %v582 = vld [vmem:[%s10 + $0x48] sm:$0xff]
  %v583 = vld [vmem:[%s10 + $0x50] sm:$0xff]
  %v584 = vld [vmem:[%s10 + $0x58] sm:$0xff]
  %v585 = vld [vmem:[%s10 + $0x60] sm:$0xff]
  %v586 = vld [vmem:[%s10 + $0x68] sm:$0xff]
  %v587 = vld [vmem:[%s10 + $0x70] sm:$0xff]
  %v588 = vld [vmem:[%s10 + $0x78] sm:$0xff]
  %589 = vmatprep.subr.mxu0 0.0
  %590 = vmatpush1.msra.mxu0 %v573
  %591 = vmatprep.subr.mxu0 0.0
  %592 = vmatpush1.msra.mxu0 %v574
  %593 = vmatprep.subr.mxu0 0.0
  %594 = vmatpush1.msra.mxu0 %v575
  %595 = vmatprep.subr.mxu0 0.0
  %596 = vmatpush1.msra.mxu0 %v576
  %597 = vmatprep.subr.mxu0 0.0
  %598 = vmatpush1.msra.mxu0 %v577
  %599 = vmatprep.subr.mxu0 0.0
  %600 = vmatpush1.msra.mxu0 %v578
  %601 = vmatprep.subr.mxu0 0.0
  %602 = vmatpush1.msra.mxu0 %v579
  %603 = vmatprep.subr.mxu0 0.0
  %604 = vmatpush1.msra.mxu0 %v580
  %605 = vmatprep.subr.mxu0 0.0
  %606 = vmatpush1.msra.mxu0 %v581
  %607 = vmatprep.subr.mxu0 0.0
  %608 = vmatpush1.msra.mxu0 %v582
  %609 = vmatprep.subr.mxu0 0.0
  %610 = vmatpush1.msra.mxu0 %v583
  %611 = vmatprep.subr.mxu0 0.0
  %612 = vmatpush1.msra.mxu0 %v584
  %613 = vmatprep.subr.mxu0 0.0
  %614 = vmatpush1.msra.mxu0 %v585
  %615 = vmatprep.subr.mxu0 0.0
  %616 = vmatpush1.msra.mxu0 %v586
  %617 = vmatprep.subr.mxu0 0.0
  %618 = vmatpush1.msra.mxu0 %v587
  %619 = vmatprep.subr.mxu0 0.0
  %620 = vmatpush1.msra.mxu0 %v588
  %621 = vmatprep.subr.mxu0 0.0
  %622 = vmatpush1.msra.mxu0 0.0
  %623 = vmatprep.subr.mxu0 0.0
  %624 = vmatpush1.msra.mxu0 0.0
  %625 = vmatprep.subr.mxu0 0.0
  %626 = vmatpush1.msra.mxu0 0.0
  %627 = vmatprep.subr.mxu0 0.0
  %628 = vmatpush1.msra.mxu0 0.0
  %629 = vmatprep.subr.mxu0 0.0
  %630 = vmatpush1.msra.mxu0 0.0
  %631 = vmatprep.subr.mxu0 0.0
  %632 = vmatpush1.msra.mxu0 0.0
  %633 = vmatprep.subr.mxu0 0.0
  %634 = vmatpush1.msra.mxu0 0.0
  %635 = vmatprep.subr.mxu0 0.0
  %636 = vmatpush1.msra.mxu0 0.0
  %637 = vmatprep.subr.mxu0 0.0
  %638 = vmatpush1.msra.mxu0 0.0
  %639 = vmatprep.subr.mxu0 0.0
  %640 = vmatpush1.msra.mxu0 0.0
  %641 = vmatprep.subr.mxu0 0.0
  %642 = vmatpush1.msra.mxu0 0.0
  %643 = vmatprep.subr.mxu0 0.0
  %644 = vmatpush1.msra.mxu0 0.0
  %645 = vmatprep.subr.mxu0 0.0
  %646 = vmatpush1.msra.mxu0 0.0
  %647 = vmatprep.subr.mxu0 0.0
  %648 = vmatpush1.msra.mxu0 0.0
  %649 = vmatprep.subr.mxu0 0.0
  %650 = vmatpush1.msra.mxu0 0.0
  %651 = vmatprep.subr.mxu0 0.0
  %652 = vmatpush1.msra.mxu0 0.0
  %653 = vmatprep.mubr.f32.mxu0 0.0
  %654 = vmatmul.mubr.f32.gmra.mrb[0].mxu0 %v572
  %v655 = vpop.f32.mrb[0].mxu0
  %v656 = vadd.f32 0.0, %v655
  %v657 = vpop.f32.mrb[0].mxu0
  %658 = vdwg.mxu0
  %v659 = vlaneseq
  %v660 = vshrl.u32 %v659, 7
  %v661 = vsub.s32 0, %v660
  %v662 = vrot.slane %v335, %v661
  %664 = vbcast.lane.b32.xlu0 %v662, 256
  %v665 = vpop.permute.xlu0 %664
  %s667 = sor.u32 256, 8
  %668 = vbcast.lane.b32.xlu0 %v662, %s667
  %v669 = vpop.permute.xlu0 %668
  %s671 = sor.u32 256, 16
  %672 = vbcast.lane.b32.xlu0 %v662, %s671
  %v673 = vpop.permute.xlu0 %672
  %s675 = sor.u32 256, 24
  %676 = vbcast.lane.b32.xlu0 %v662, %s675
  %v677 = vpop.permute.xlu0 %676
  %s679 = sor.u32 256, 32
  %680 = vbcast.lane.b32.xlu0 %v662, %s679
  %v681 = vpop.permute.xlu0 %680
  %s683 = sor.u32 256, 40
  %684 = vbcast.lane.b32.xlu0 %v662, %s683
  %v685 = vpop.permute.xlu0 %684
  %s687 = sor.u32 256, 48
  %688 = vbcast.lane.b32.xlu0 %v662, %s687
  %v689 = vpop.permute.xlu0 %688
  %s691 = sor.u32 256, 56
  %692 = vbcast.lane.b32.xlu0 %v662, %s691
  %v693 = vpop.permute.xlu0 %692
  %v694 = vlaneseq
  %v695 = vshrl.u32 %v694, 7
  %v696 = vsub.s32 1, %v695
  %v697 = vrot.slane %v335, %v696
  %699 = vbcast.lane.b32.xlu0 %v697, 256
  %v700 = vpop.permute.xlu0 %699
  %s702 = sor.u32 256, 8
  %703 = vbcast.lane.b32.xlu0 %v697, %s702
  %v704 = vpop.permute.xlu0 %703
  %s706 = sor.u32 256, 16
  %707 = vbcast.lane.b32.xlu0 %v697, %s706
  %v708 = vpop.permute.xlu0 %707
  %s710 = sor.u32 256, 24
  %711 = vbcast.lane.b32.xlu0 %v697, %s710
  %v712 = vpop.permute.xlu0 %711
  %s714 = sor.u32 256, 32
  %715 = vbcast.lane.b32.xlu0 %v697, %s714
  %v716 = vpop.permute.xlu0 %715
  %s718 = sor.u32 256, 40
  %719 = vbcast.lane.b32.xlu0 %v697, %s718
  %v720 = vpop.permute.xlu0 %719
  %s722 = sor.u32 256, 48
  %723 = vbcast.lane.b32.xlu0 %v697, %s722
  %v724 = vpop.permute.xlu0 %723
  %s726 = sor.u32 256, 56
  %727 = vbcast.lane.b32.xlu0 %v697, %s726
  %v728 = vpop.permute.xlu0 %727
  %v729 = vlaneseq
  %v730 = vshrl.u32 %v729, 7
  %v731 = vsub.s32 2, %v730
  %v732 = vrot.slane %v335, %v731
  %734 = vbcast.lane.b32.xlu0 %v732, 256
  %v735 = vpop.permute.xlu0 %734
  %s737 = sor.u32 256, 8
  %738 = vbcast.lane.b32.xlu0 %v732, %s737
  %v739 = vpop.permute.xlu0 %738
  %s741 = sor.u32 256, 16
  %742 = vbcast.lane.b32.xlu0 %v732, %s741
  %v743 = vpop.permute.xlu0 %742
  %s745 = sor.u32 256, 24
  %746 = vbcast.lane.b32.xlu0 %v732, %s745
  %v747 = vpop.permute.xlu0 %746
  %s749 = sor.u32 256, 32
  %750 = vbcast.lane.b32.xlu0 %v732, %s749
  %v751 = vpop.permute.xlu0 %750
  %s753 = sor.u32 256, 40
  %754 = vbcast.lane.b32.xlu0 %v732, %s753
  %v755 = vpop.permute.xlu0 %754
  %s757 = sor.u32 256, 48
  %758 = vbcast.lane.b32.xlu0 %v732, %s757
  %v759 = vpop.permute.xlu0 %758
  %s761 = sor.u32 256, 56
  %762 = vbcast.lane.b32.xlu0 %v732, %s761
  %v763 = vpop.permute.xlu0 %762
  %v764 = vlaneseq
  %v765 = vshrl.u32 %v764, 7
  %v766 = vsub.s32 3, %v765
  %v767 = vrot.slane %v335, %v766
  %769 = vbcast.lane.b32.xlu0 %v767, 256
  %v770 = vpop.permute.xlu0 %769
  %s772 = sor.u32 256, 8
  %773 = vbcast.lane.b32.xlu0 %v767, %s772
  %v774 = vpop.permute.xlu0 %773
  %s776 = sor.u32 256, 16
  %777 = vbcast.lane.b32.xlu0 %v767, %s776
  %v778 = vpop.permute.xlu0 %777
  %s780 = sor.u32 256, 24
  %781 = vbcast.lane.b32.xlu0 %v767, %s780
  %v782 = vpop.permute.xlu0 %781
  %s784 = sor.u32 256, 32
  %785 = vbcast.lane.b32.xlu0 %v767, %s784
  %v786 = vpop.permute.xlu0 %785
  %s788 = sor.u32 256, 40
  %789 = vbcast.lane.b32.xlu0 %v767, %s788
  %v790 = vpop.permute.xlu0 %789
  %s792 = sor.u32 256, 48
  %793 = vbcast.lane.b32.xlu0 %v767, %s792
  %v794 = vpop.permute.xlu0 %793
  %s796 = sor.u32 256, 56
  %797 = vbcast.lane.b32.xlu0 %v767, %s796
  %v798 = vpop.permute.xlu0 %797
  %v799 = vlaneseq
  %v800 = vshrl.u32 %v799, 7
  %v801 = vsub.s32 4, %v800
  %v802 = vrot.slane %v335, %v801
  %804 = vbcast.lane.b32.xlu0 %v802, 256
  %v805 = vpop.permute.xlu0 %804
  %s807 = sor.u32 256, 8
  %808 = vbcast.lane.b32.xlu0 %v802, %s807
  %v809 = vpop.permute.xlu0 %808
  %s811 = sor.u32 256, 16
  %812 = vbcast.lane.b32.xlu0 %v802, %s811
  %v813 = vpop.permute.xlu0 %812
  %s815 = sor.u32 256, 24
  %816 = vbcast.lane.b32.xlu0 %v802, %s815
  %v817 = vpop.permute.xlu0 %816
  %s819 = sor.u32 256, 32
  %820 = vbcast.lane.b32.xlu0 %v802, %s819
  %v821 = vpop.permute.xlu0 %820
  %s823 = sor.u32 256, 40
  %824 = vbcast.lane.b32.xlu0 %v802, %s823
  %v825 = vpop.permute.xlu0 %824
  %s827 = sor.u32 256, 48
  %828 = vbcast.lane.b32.xlu0 %v802, %s827
  %v829 = vpop.permute.xlu0 %828
  %s831 = sor.u32 256, 56
  %832 = vbcast.lane.b32.xlu0 %v802, %s831
  %v833 = vpop.permute.xlu0 %832
  %v834 = vlaneseq
  %v835 = vshrl.u32 %v834, 7
  %v836 = vsub.s32 5, %v835
  %v837 = vrot.slane %v335, %v836
  %839 = vbcast.lane.b32.xlu0 %v837, 256
  %v840 = vpop.permute.xlu0 %839
  %s842 = sor.u32 256, 8
  %843 = vbcast.lane.b32.xlu0 %v837, %s842
  %v844 = vpop.permute.xlu0 %843
  %s846 = sor.u32 256, 16
  %847 = vbcast.lane.b32.xlu0 %v837, %s846
  %v848 = vpop.permute.xlu0 %847
  %s850 = sor.u32 256, 24
  %851 = vbcast.lane.b32.xlu0 %v837, %s850
  %v852 = vpop.permute.xlu0 %851
  %s854 = sor.u32 256, 32
  %855 = vbcast.lane.b32.xlu0 %v837, %s854
  %v856 = vpop.permute.xlu0 %855
  %s858 = sor.u32 256, 40
  %859 = vbcast.lane.b32.xlu0 %v837, %s858
  %v860 = vpop.permute.xlu0 %859
  %s862 = sor.u32 256, 48
  %863 = vbcast.lane.b32.xlu0 %v837, %s862
  %v864 = vpop.permute.xlu0 %863
  %s866 = sor.u32 256, 56
  %867 = vbcast.lane.b32.xlu0 %v837, %s866
  %v868 = vpop.permute.xlu0 %867
  %v869 = vlaneseq
  %v870 = vshrl.u32 %v869, 7
  %v871 = vsub.s32 6, %v870
  %v872 = vrot.slane %v335, %v871
  %874 = vbcast.lane.b32.xlu0 %v872, 256
  %v875 = vpop.permute.xlu0 %874
  %s877 = sor.u32 256, 8
  %878 = vbcast.lane.b32.xlu0 %v872, %s877
  %v879 = vpop.permute.xlu0 %878
  %s881 = sor.u32 256, 16
  %882 = vbcast.lane.b32.xlu0 %v872, %s881
  %v883 = vpop.permute.xlu0 %882
  %s885 = sor.u32 256, 24
  %886 = vbcast.lane.b32.xlu0 %v872, %s885
  %v887 = vpop.permute.xlu0 %886
  %s889 = sor.u32 256, 32
  %890 = vbcast.lane.b32.xlu0 %v872, %s889
  %v891 = vpop.permute.xlu0 %890
  %s893 = sor.u32 256, 40
  %894 = vbcast.lane.b32.xlu0 %v872, %s893
  %v895 = vpop.permute.xlu0 %894
  %s897 = sor.u32 256, 48
  %898 = vbcast.lane.b32.xlu0 %v872, %s897
  %v899 = vpop.permute.xlu0 %898
  %s901 = sor.u32 256, 56
  %902 = vbcast.lane.b32.xlu0 %v872, %s901
  %v903 = vpop.permute.xlu0 %902
  %v904 = vlaneseq
  %v905 = vshrl.u32 %v904, 7
  %v906 = vsub.s32 7, %v905
  %v907 = vrot.slane %v335, %v906
  %909 = vbcast.lane.b32.xlu0 %v907, 256
  %v910 = vpop.permute.xlu0 %909
  %s912 = sor.u32 256, 8
  %913 = vbcast.lane.b32.xlu0 %v907, %s912
  %v914 = vpop.permute.xlu0 %913
  %s916 = sor.u32 256, 16
  %917 = vbcast.lane.b32.xlu0 %v907, %s916
  %v918 = vpop.permute.xlu0 %917
  %s920 = sor.u32 256, 24
  %921 = vbcast.lane.b32.xlu0 %v907, %s920
  %v922 = vpop.permute.xlu0 %921
  %s924 = sor.u32 256, 32
  %925 = vbcast.lane.b32.xlu0 %v907, %s924
  %v926 = vpop.permute.xlu0 %925
  %s928 = sor.u32 256, 40
  %929 = vbcast.lane.b32.xlu0 %v907, %s928
  %v930 = vpop.permute.xlu0 %929
  %s932 = sor.u32 256, 48
  %933 = vbcast.lane.b32.xlu0 %v907, %s932
  %v934 = vpop.permute.xlu0 %933
  %s936 = sor.u32 256, 56
  %937 = vbcast.lane.b32.xlu0 %v907, %s936
  %v938 = vpop.permute.xlu0 %937
  %v939 = vmul.f32 %v497, 0.70710677
  %v941 = vcombine.high %v939, %v939
  %v943 = vunpack.c.l.s4 1966171168
  %v944 = vunpack.c.0.s8 %v943
  %v945 = vlaneseq
  %v946 = vshrl.u32 %v945, 7
  %v947 = vsub.s32 %v944, %v946
  %v948 = vrot.slane %v939, %v947
  %v950 = vunpack.c.l.s4 1966171168
  %v951 = vunpack.c.0.s8 %v950
  %v952 = vlaneseq
  %v953 = vshrl.u32 %v952, 7
  %v954 = vsub.s32 %v951, %v953
  %v955 = vrot.slane %v941, %v954
  %v956 = vcombine.high %v948, %v948
  %v957 = vcombine.high %v955, %v955
  %v959 = vunpack.c.l.s4 1966171168
  %v960 = vunpack.c.0.s8 %v959
  %v961 = vlaneseq
  %v962 = vshrl.u32 %v961, 7
  %v963 = vsub.s32 %v960, %v962
  %v964 = vrot.slane %v948, %v963
  %v966 = vunpack.c.l.s4 1966171168
  %v967 = vunpack.c.0.s8 %v966
  %v968 = vlaneseq
  %v969 = vshrl.u32 %v968, 7
  %v970 = vsub.s32 %v967, %v969
  %v971 = vrot.slane %v955, %v970
  %v973 = vunpack.c.l.s4 1966171168
  %v974 = vunpack.c.0.s8 %v973
  %v975 = vlaneseq
  %v976 = vshrl.u32 %v975, 7
  %v977 = vsub.s32 %v974, %v976
  %v978 = vrot.slane %v956, %v977
  %v980 = vunpack.c.l.s4 1966171168
  %v981 = vunpack.c.0.s8 %v980
  %v982 = vlaneseq
  %v983 = vshrl.u32 %v982, 7
  %v984 = vsub.s32 %v981, %v983
  %v985 = vrot.slane %v957, %v984
  %v986 = vcombine.high %v964, %v964
  %v987 = vcombine.high %v971, %v971
  %v988 = vcombine.high %v978, %v978
  %v989 = vcombine.high %v985, %v985
  %v990 = vlaneseq
  %v991 = vshrl.u32 %v990, 7
  %v992 = vsub.s32 0, %v991
  %v993 = vrot.slane %v964, %v992
  %v994 = vlaneseq
  %v995 = vshrl.u32 %v994, 7
  %v996 = vsub.s32 0, %v995
  %v997 = vrot.slane %v978, %v996
  %v998 = vlaneseq
  %v999 = vshrl.u32 %v998, 7
  %v1000 = vsub.s32 0, %v999
  %v1001 = vrot.slane %v986, %v1000
  %v1002 = vlaneseq
  %v1003 = vshrl.u32 %v1002, 7
  %v1004 = vsub.s32 0, %v1003
  %v1005 = vrot.slane %v988, %v1004
  %v1006 = vlaneseq
  %v1007 = vshrl.u32 %v1006, 7
  %v1008 = vsub.s32 0, %v1007
  %v1009 = vrot.slane %v971, %v1008
  %v1010 = vlaneseq
  %v1011 = vshrl.u32 %v1010, 7
  %v1012 = vsub.s32 0, %v1011
  %v1013 = vrot.slane %v985, %v1012
  %v1014 = vlaneseq
  %v1015 = vshrl.u32 %v1014, 7
  %v1016 = vsub.s32 0, %v1015
  %v1017 = vrot.slane %v987, %v1016
  %v1018 = vlaneseq
  %v1019 = vshrl.u32 %v1018, 7
  %v1020 = vsub.s32 0, %v1019
  %v1021 = vrot.slane %v989, %v1020
  %v1030 = vmul.f32 %v665, %v993
  %v1031 = vmul.f32 %v669, %v993
  %v1032 = vmul.f32 %v673, %v993
  %v1033 = vmul.f32 %v677, %v993
  %v1034 = vmul.f32 %v681, %v993
  %v1035 = vmul.f32 %v685, %v993
  %v1036 = vmul.f32 %v689, %v993
  %v1037 = vmul.f32 %v693, %v993
  %v1038 = vmul.f32 %v700, %v997
  %v1039 = vmul.f32 %v704, %v997
  %v1040 = vmul.f32 %v708, %v997
  %v1041 = vmul.f32 %v712, %v997
  %v1042 = vmul.f32 %v716, %v997
  %v1043 = vmul.f32 %v720, %v997
  %v1044 = vmul.f32 %v724, %v997
  %v1045 = vmul.f32 %v728, %v997
  %v1046 = vmul.f32 %v735, %v1001
  %v1047 = vmul.f32 %v739, %v1001
  %v1048 = vmul.f32 %v743, %v1001
  %v1049 = vmul.f32 %v747, %v1001
  %v1050 = vmul.f32 %v751, %v1001
  %v1051 = vmul.f32 %v755, %v1001
  %v1052 = vmul.f32 %v759, %v1001
  %v1053 = vmul.f32 %v763, %v1001
  %v1054 = vmul.f32 %v770, %v1005
  %v1055 = vmul.f32 %v774, %v1005
  %v1056 = vmul.f32 %v778, %v1005
  %v1057 = vmul.f32 %v782, %v1005
  %v1058 = vmul.f32 %v786, %v1005
  %v1059 = vmul.f32 %v790, %v1005
  %v1060 = vmul.f32 %v794, %v1005
  %v1061 = vmul.f32 %v798, %v1005
  %v1062 = vmul.f32 %v805, %v1009
  %v1063 = vmul.f32 %v809, %v1009
  %v1064 = vmul.f32 %v813, %v1009
  %v1065 = vmul.f32 %v817, %v1009
  %v1066 = vmul.f32 %v821, %v1009
  %v1067 = vmul.f32 %v825, %v1009
  %v1068 = vmul.f32 %v829, %v1009
  %v1069 = vmul.f32 %v833, %v1009
  %v1070 = vmul.f32 %v840, %v1013
  %v1071 = vmul.f32 %v844, %v1013
  %v1072 = vmul.f32 %v848, %v1013
  %v1073 = vmul.f32 %v852, %v1013
  %v1074 = vmul.f32 %v856, %v1013
  %v1075 = vmul.f32 %v860, %v1013
  %v1076 = vmul.f32 %v864, %v1013
  %v1077 = vmul.f32 %v868, %v1013
  %v1078 = vmul.f32 %v875, %v1017
  %v1079 = vmul.f32 %v879, %v1017
  %v1080 = vmul.f32 %v883, %v1017
  %v1081 = vmul.f32 %v887, %v1017
  %v1082 = vmul.f32 %v891, %v1017
  %v1083 = vmul.f32 %v895, %v1017
  %v1084 = vmul.f32 %v899, %v1017
  %v1085 = vmul.f32 %v903, %v1017
  %v1086 = vmul.f32 %v910, %v1021
  %v1087 = vmul.f32 %v914, %v1021
  %v1088 = vmul.f32 %v918, %v1021
  %v1089 = vmul.f32 %v922, %v1021
  %v1090 = vmul.f32 %v926, %v1021
  %v1091 = vmul.f32 %v930, %v1021
  %v1092 = vmul.f32 %v934, %v1021
  %v1093 = vmul.f32 %v938, %v1021
  %vm1094 = vcmask 523264
  %v1095 = vsel %vm1094, %v1030, -inf
  %1096 = vmax.xlane.f32.xlu0 %v1095
  %v1097 = vpop.xlane.xlu0 %1096
  %v1098 = vsel %vm1094, %v1031, -inf
  %1099 = vmax.xlane.f32.xlu0 %v1098
  %v1100 = vpop.xlane.xlu0 %1099
  %v1101 = vsel %vm1094, %v1032, -inf
  %1102 = vmax.xlane.f32.xlu0 %v1101
  %v1103 = vpop.xlane.xlu0 %1102
  %v1104 = vsel %vm1094, %v1033, -inf
  %1105 = vmax.xlane.f32.xlu0 %v1104
  %v1106 = vpop.xlane.xlu0 %1105
  %v1107 = vsel %vm1094, %v1034, -inf
  %1108 = vmax.xlane.f32.xlu0 %v1107
  %v1109 = vpop.xlane.xlu0 %1108
  %v1110 = vsel %vm1094, %v1035, -inf
  %1111 = vmax.xlane.f32.xlu0 %v1110
  %v1112 = vpop.xlane.xlu0 %1111
  %v1113 = vsel %vm1094, %v1036, -inf
  %1114 = vmax.xlane.f32.xlu0 %v1113
  %v1115 = vpop.xlane.xlu0 %1114
  %v1116 = vsel %vm1094, %v1037, -inf
  %1117 = vmax.xlane.f32.xlu0 %v1116
  %v1118 = vpop.xlane.xlu0 %1117
  %v1119 = vsel %vm1094, %v1038, -inf
  %1120 = vmax.xlane.f32.xlu0 %v1119
  %v1121 = vpop.xlane.xlu0 %1120
  %v1122 = vsel %vm1094, %v1039, -inf
  %1123 = vmax.xlane.f32.xlu0 %v1122
  %v1124 = vpop.xlane.xlu0 %1123
  %v1125 = vsel %vm1094, %v1040, -inf
  %1126 = vmax.xlane.f32.xlu0 %v1125
  %v1127 = vpop.xlane.xlu0 %1126
  %v1128 = vsel %vm1094, %v1041, -inf
  %1129 = vmax.xlane.f32.xlu0 %v1128
  %v1130 = vpop.xlane.xlu0 %1129
  %v1131 = vsel %vm1094, %v1042, -inf
  %1132 = vmax.xlane.f32.xlu0 %v1131
  %v1133 = vpop.xlane.xlu0 %1132
  %v1134 = vsel %vm1094, %v1043, -inf
  %1135 = vmax.xlane.f32.xlu0 %v1134
  %v1136 = vpop.xlane.xlu0 %1135
  %v1137 = vsel %vm1094, %v1044, -inf
  %1138 = vmax.xlane.f32.xlu0 %v1137
  %v1139 = vpop.xlane.xlu0 %1138
  %v1140 = vsel %vm1094, %v1045, -inf
  %1141 = vmax.xlane.f32.xlu0 %v1140
  %v1142 = vpop.xlane.xlu0 %1141
  %v1143 = vsel %vm1094, %v1046, -inf
  %1144 = vmax.xlane.f32.xlu0 %v1143
  %v1145 = vpop.xlane.xlu0 %1144
  %v1146 = vsel %vm1094, %v1047, -inf
  %1147 = vmax.xlane.f32.xlu0 %v1146
  %v1148 = vpop.xlane.xlu0 %1147
  %v1149 = vsel %vm1094, %v1048, -inf
  %1150 = vmax.xlane.f32.xlu0 %v1149
  %v1151 = vpop.xlane.xlu0 %1150
  %v1152 = vsel %vm1094, %v1049, -inf
  %1153 = vmax.xlane.f32.xlu0 %v1152
  %v1154 = vpop.xlane.xlu0 %1153
  %v1155 = vsel %vm1094, %v1050, -inf
  %1156 = vmax.xlane.f32.xlu0 %v1155
  %v1157 = vpop.xlane.xlu0 %1156
  %v1158 = vsel %vm1094, %v1051, -inf
  %1159 = vmax.xlane.f32.xlu0 %v1158
  %v1160 = vpop.xlane.xlu0 %1159
  %v1161 = vsel %vm1094, %v1052, -inf
  %1162 = vmax.xlane.f32.xlu0 %v1161
  %v1163 = vpop.xlane.xlu0 %1162
  %v1164 = vsel %vm1094, %v1053, -inf
  %1165 = vmax.xlane.f32.xlu0 %v1164
  %v1166 = vpop.xlane.xlu0 %1165
  %v1167 = vsel %vm1094, %v1054, -inf
  %1168 = vmax.xlane.f32.xlu0 %v1167
  %v1169 = vpop.xlane.xlu0 %1168
  %v1170 = vsel %vm1094, %v1055, -inf
  %1171 = vmax.xlane.f32.xlu0 %v1170
  %v1172 = vpop.xlane.xlu0 %1171
  %v1173 = vsel %vm1094, %v1056, -inf
  %1174 = vmax.xlane.f32.xlu0 %v1173
  %v1175 = vpop.xlane.xlu0 %1174
  %v1176 = vsel %vm1094, %v1057, -inf
  %1177 = vmax.xlane.f32.xlu0 %v1176
  %v1178 = vpop.xlane.xlu0 %1177
  %v1179 = vsel %vm1094, %v1058, -inf
  %1180 = vmax.xlane.f32.xlu0 %v1179
  %v1181 = vpop.xlane.xlu0 %1180
  %v1182 = vsel %vm1094, %v1059, -inf
  %1183 = vmax.xlane.f32.xlu0 %v1182
  %v1184 = vpop.xlane.xlu0 %1183
  %v1185 = vsel %vm1094, %v1060, -inf
  %1186 = vmax.xlane.f32.xlu0 %v1185
  %v1187 = vpop.xlane.xlu0 %1186
  %v1188 = vsel %vm1094, %v1061, -inf
  %1189 = vmax.xlane.f32.xlu0 %v1188
  %v1190 = vpop.xlane.xlu0 %1189
  %v1191 = vsel %vm1094, %v1062, -inf
  %1192 = vmax.xlane.f32.xlu0 %v1191
  %v1193 = vpop.xlane.xlu0 %1192
  %v1194 = vsel %vm1094, %v1063, -inf
  %1195 = vmax.xlane.f32.xlu0 %v1194
  %v1196 = vpop.xlane.xlu0 %1195
  %v1197 = vsel %vm1094, %v1064, -inf
  %1198 = vmax.xlane.f32.xlu0 %v1197
  %v1199 = vpop.xlane.xlu0 %1198
  %v1200 = vsel %vm1094, %v1065, -inf
  %1201 = vmax.xlane.f32.xlu0 %v1200
  %v1202 = vpop.xlane.xlu0 %1201
  %v1203 = vsel %vm1094, %v1066, -inf
  %1204 = vmax.xlane.f32.xlu0 %v1203
  %v1205 = vpop.xlane.xlu0 %1204
  %v1206 = vsel %vm1094, %v1067, -inf
  %1207 = vmax.xlane.f32.xlu0 %v1206
  %v1208 = vpop.xlane.xlu0 %1207
  %v1209 = vsel %vm1094, %v1068, -inf
  %1210 = vmax.xlane.f32.xlu0 %v1209
  %v1211 = vpop.xlane.xlu0 %1210
  %v1212 = vsel %vm1094, %v1069, -inf
  %1213 = vmax.xlane.f32.xlu0 %v1212
  %v1214 = vpop.xlane.xlu0 %1213
  %v1215 = vsel %vm1094, %v1070, -inf
  %1216 = vmax.xlane.f32.xlu0 %v1215
  %v1217 = vpop.xlane.xlu0 %1216
  %v1218 = vsel %vm1094, %v1071, -inf
  %1219 = vmax.xlane.f32.xlu0 %v1218
  %v1220 = vpop.xlane.xlu0 %1219
  %v1221 = vsel %vm1094, %v1072, -inf
  %1222 = vmax.xlane.f32.xlu0 %v1221
  %v1223 = vpop.xlane.xlu0 %1222
  %v1224 = vsel %vm1094, %v1073, -inf
  %1225 = vmax.xlane.f32.xlu0 %v1224
  %v1226 = vpop.xlane.xlu0 %1225
  %v1227 = vsel %vm1094, %v1074, -inf
  %1228 = vmax.xlane.f32.xlu0 %v1227
  %v1229 = vpop.xlane.xlu0 %1228
  %v1230 = vsel %vm1094, %v1075, -inf
  %1231 = vmax.xlane.f32.xlu0 %v1230
  %v1232 = vpop.xlane.xlu0 %1231
  %v1233 = vsel %vm1094, %v1076, -inf
  %1234 = vmax.xlane.f32.xlu0 %v1233
  %v1235 = vpop.xlane.xlu0 %1234
  %v1236 = vsel %vm1094, %v1077, -inf
  %1237 = vmax.xlane.f32.xlu0 %v1236
  %v1238 = vpop.xlane.xlu0 %1237
  %v1239 = vsel %vm1094, %v1078, -inf
  %1240 = vmax.xlane.f32.xlu0 %v1239
  %v1241 = vpop.xlane.xlu0 %1240
  %v1242 = vsel %vm1094, %v1079, -inf
  %1243 = vmax.xlane.f32.xlu0 %v1242
  %v1244 = vpop.xlane.xlu0 %1243
  %v1245 = vsel %vm1094, %v1080, -inf
  %1246 = vmax.xlane.f32.xlu0 %v1245
  %v1247 = vpop.xlane.xlu0 %1246
  %v1248 = vsel %vm1094, %v1081, -inf
  %1249 = vmax.xlane.f32.xlu0 %v1248
  %v1250 = vpop.xlane.xlu0 %1249
  %v1251 = vsel %vm1094, %v1082, -inf
  %1252 = vmax.xlane.f32.xlu0 %v1251
  %v1253 = vpop.xlane.xlu0 %1252
  %v1254 = vsel %vm1094, %v1083, -inf
  %1255 = vmax.xlane.f32.xlu0 %v1254
  %v1256 = vpop.xlane.xlu0 %1255
  %v1257 = vsel %vm1094, %v1084, -inf
  %1258 = vmax.xlane.f32.xlu0 %v1257
  %v1259 = vpop.xlane.xlu0 %1258
  %v1260 = vsel %vm1094, %v1085, -inf
  %1261 = vmax.xlane.f32.xlu0 %v1260
  %v1262 = vpop.xlane.xlu0 %1261
  %v1263 = vsel %vm1094, %v1086, -inf
  %1264 = vmax.xlane.f32.xlu0 %v1263
  %v1265 = vpop.xlane.xlu0 %1264
  %v1266 = vsel %vm1094, %v1087, -inf
  %1267 = vmax.xlane.f32.xlu0 %v1266
  %v1268 = vpop.xlane.xlu0 %1267
  %v1269 = vsel %vm1094, %v1088, -inf
  %1270 = vmax.xlane.f32.xlu0 %v1269
  %v1271 = vpop.xlane.xlu0 %1270
  %v1272 = vsel %vm1094, %v1089, -inf
  %1273 = vmax.xlane.f32.xlu0 %v1272
  %v1274 = vpop.xlane.xlu0 %1273
  %v1275 = vsel %vm1094, %v1090, -inf
  %1276 = vmax.xlane.f32.xlu0 %v1275
  %v1277 = vpop.xlane.xlu0 %1276
  %v1278 = vsel %vm1094, %v1091, -inf
  %1279 = vmax.xlane.f32.xlu0 %v1278
  %v1280 = vpop.xlane.xlu0 %1279
  %v1281 = vsel %vm1094, %v1092, -inf
  %1282 = vmax.xlane.f32.xlu0 %v1281
  %v1283 = vpop.xlane.xlu0 %1282
  %v1284 = vsel %vm1094, %v1093, -inf
  %1285 = vmax.xlane.f32.xlu0 %v1284
  %v1286 = vpop.xlane.xlu0 %1285
  %v1287 = vsub.f32 %v1030, %v1097
  %v1288 = vsub.f32 %v1031, %v1100
  %v1289 = vsub.f32 %v1032, %v1103
  %v1290 = vsub.f32 %v1033, %v1106
  %v1291 = vsub.f32 %v1034, %v1109
  %v1292 = vsub.f32 %v1035, %v1112
  %v1293 = vsub.f32 %v1036, %v1115
  %v1294 = vsub.f32 %v1037, %v1118
  %v1295 = vsub.f32 %v1038, %v1121
  %v1296 = vsub.f32 %v1039, %v1124
  %v1297 = vsub.f32 %v1040, %v1127
  %v1298 = vsub.f32 %v1041, %v1130
  %v1299 = vsub.f32 %v1042, %v1133
  %v1300 = vsub.f32 %v1043, %v1136
  %v1301 = vsub.f32 %v1044, %v1139
  %v1302 = vsub.f32 %v1045, %v1142
  %v1303 = vsub.f32 %v1046, %v1145
  %v1304 = vsub.f32 %v1047, %v1148
  %v1305 = vsub.f32 %v1048, %v1151
  %v1306 = vsub.f32 %v1049, %v1154
  %v1307 = vsub.f32 %v1050, %v1157
  %v1308 = vsub.f32 %v1051, %v1160
  %v1309 = vsub.f32 %v1052, %v1163
  %v1310 = vsub.f32 %v1053, %v1166
  %v1311 = vsub.f32 %v1054, %v1169
  %v1312 = vsub.f32 %v1055, %v1172
  %v1313 = vsub.f32 %v1056, %v1175
  %v1314 = vsub.f32 %v1057, %v1178
  %v1315 = vsub.f32 %v1058, %v1181
  %v1316 = vsub.f32 %v1059, %v1184
  %v1317 = vsub.f32 %v1060, %v1187
  %v1318 = vsub.f32 %v1061, %v1190
  %v1319 = vsub.f32 %v1062, %v1193
  %v1320 = vsub.f32 %v1063, %v1196
  %v1321 = vsub.f32 %v1064, %v1199
  %v1322 = vsub.f32 %v1065, %v1202
  %v1323 = vsub.f32 %v1066, %v1205
  %v1324 = vsub.f32 %v1067, %v1208
  %v1325 = vsub.f32 %v1068, %v1211
  %v1326 = vsub.f32 %v1069, %v1214
  %v1327 = vsub.f32 %v1070, %v1217
  %v1328 = vsub.f32 %v1071, %v1220
  %v1329 = vsub.f32 %v1072, %v1223
  %v1330 = vsub.f32 %v1073, %v1226
  %v1331 = vsub.f32 %v1074, %v1229
  %v1332 = vsub.f32 %v1075, %v1232
  %v1333 = vsub.f32 %v1076, %v1235
  %v1334 = vsub.f32 %v1077, %v1238
  %v1335 = vsub.f32 %v1078, %v1241
  %v1336 = vsub.f32 %v1079, %v1244
  %v1337 = vsub.f32 %v1080, %v1247
  %v1338 = vsub.f32 %v1081, %v1250
  %v1339 = vsub.f32 %v1082, %v1253
  %v1340 = vsub.f32 %v1083, %v1256
  %v1341 = vsub.f32 %v1084, %v1259
  %v1342 = vsub.f32 %v1085, %v1262
  %v1343 = vsub.f32 %v1086, %v1265
  %v1344 = vsub.f32 %v1087, %v1268
  %v1345 = vsub.f32 %v1088, %v1271
  %v1346 = vsub.f32 %v1089, %v1274
  %v1347 = vsub.f32 %v1090, %v1277
  %v1348 = vsub.f32 %v1091, %v1280
  %v1349 = vsub.f32 %v1092, %v1283
  %v1350 = vsub.f32 %v1093, %v1286
  %v1351 = vmul.f32 %v1287, 1.442695
  %v1352 = vpow.pop %v1351
  %v1353 = vmul.f32 %v1288, 1.442695
  %v1354 = vpow.pop %v1353
  %v1355 = vmul.f32 %v1289, 1.442695
  %v1356 = vpow.pop %v1355
  %v1357 = vmul.f32 %v1290, 1.442695
  %v1358 = vpow.pop %v1357
  %v1359 = vmul.f32 %v1291, 1.442695
  %v1360 = vpow.pop %v1359
  %v1361 = vmul.f32 %v1292, 1.442695
  %v1362 = vpow.pop %v1361
  %v1363 = vmul.f32 %v1293, 1.442695
  %v1364 = vpow.pop %v1363
  %v1365 = vmul.f32 %v1294, 1.442695
  %v1366 = vpow.pop %v1365
  %v1367 = vmul.f32 %v1295, 1.442695
  %v1368 = vpow.pop %v1367
  %v1369 = vmul.f32 %v1296, 1.442695
  %v1370 = vpow.pop %v1369
  %v1371 = vmul.f32 %v1297, 1.442695
  %v1372 = vpow.pop %v1371
  %v1373 = vmul.f32 %v1298, 1.442695
  %v1374 = vpow.pop %v1373
  %v1375 = vmul.f32 %v1299, 1.442695
  %v1376 = vpow.pop %v1375
  %v1377 = vmul.f32 %v1300, 1.442695
  %v1378 = vpow.pop %v1377
  %v1379 = vmul.f32 %v1301, 1.442695
  %v1380 = vpow.pop %v1379
  %v1381 = vmul.f32 %v1302, 1.442695
  %v1382 = vpow.pop %v1381
  %v1383 = vmul.f32 %v1303, 1.442695
  %v1384 = vpow.pop %v1383
  %v1385 = vmul.f32 %v1304, 1.442695
  %v1386 = vpow.pop %v1385
  %v1387 = vmul.f32 %v1305, 1.442695
  %v1388 = vpow.pop %v1387
  %v1389 = vmul.f32 %v1306, 1.442695
  %v1390 = vpow.pop %v1389
  %v1391 = vmul.f32 %v1307, 1.442695
  %v1392 = vpow.pop %v1391
  %v1393 = vmul.f32 %v1308, 1.442695
  %v1394 = vpow.pop %v1393
  %v1395 = vmul.f32 %v1309, 1.442695
  %v1396 = vpow.pop %v1395
  %v1397 = vmul.f32 %v1310, 1.442695
  %v1398 = vpow.pop %v1397
  %v1399 = vmul.f32 %v1311, 1.442695
  %v1400 = vpow.pop %v1399
  %v1401 = vmul.f32 %v1312, 1.442695
  %v1402 = vpow.pop %v1401
  %v1403 = vmul.f32 %v1313, 1.442695
  %v1404 = vpow.pop %v1403
  %v1405 = vmul.f32 %v1314, 1.442695
  %v1406 = vpow.pop %v1405
  %v1407 = vmul.f32 %v1315, 1.442695
  %v1408 = vpow.pop %v1407
  %v1409 = vmul.f32 %v1316, 1.442695
  %v1410 = vpow.pop %v1409
  %v1411 = vmul.f32 %v1317, 1.442695
  %v1412 = vpow.pop %v1411
  %v1413 = vmul.f32 %v1318, 1.442695
  %v1414 = vpow.pop %v1413
  %v1415 = vmul.f32 %v1319, 1.442695
  %v1416 = vpow.pop %v1415
  %v1417 = vmul.f32 %v1320, 1.442695
  %v1418 = vpow.pop %v1417
  %v1419 = vmul.f32 %v1321, 1.442695
  %v1420 = vpow.pop %v1419
  %v1421 = vmul.f32 %v1322, 1.442695
  %v1422 = vpow.pop %v1421
  %v1423 = vmul.f32 %v1323, 1.442695
  %v1424 = vpow.pop %v1423
  %v1425 = vmul.f32 %v1324, 1.442695
  %v1426 = vpow.pop %v1425
  %v1427 = vmul.f32 %v1325, 1.442695
  %v1428 = vpow.pop %v1427
  %v1429 = vmul.f32 %v1326, 1.442695
  %v1430 = vpow.pop %v1429
  %v1431 = vmul.f32 %v1327, 1.442695
  %v1432 = vpow.pop %v1431
  %v1433 = vmul.f32 %v1328, 1.442695
  %v1434 = vpow.pop %v1433
  %v1435 = vmul.f32 %v1329, 1.442695
  %v1436 = vpow.pop %v1435
  %v1437 = vmul.f32 %v1330, 1.442695
  %v1438 = vpow.pop %v1437
  %v1439 = vmul.f32 %v1331, 1.442695
  %v1440 = vpow.pop %v1439
  %v1441 = vmul.f32 %v1332, 1.442695
  %v1442 = vpow.pop %v1441
  %v1443 = vmul.f32 %v1333, 1.442695
  %v1444 = vpow.pop %v1443
  %v1445 = vmul.f32 %v1334, 1.442695
  %v1446 = vpow.pop %v1445
  %v1447 = vmul.f32 %v1335, 1.442695
  %v1448 = vpow.pop %v1447
  %v1449 = vmul.f32 %v1336, 1.442695
  %v1450 = vpow.pop %v1449
  %v1451 = vmul.f32 %v1337, 1.442695
  %v1452 = vpow.pop %v1451
  %v1453 = vmul.f32 %v1338, 1.442695
  %v1454 = vpow.pop %v1453
  %v1455 = vmul.f32 %v1339, 1.442695
  %v1456 = vpow.pop %v1455
  %v1457 = vmul.f32 %v1340, 1.442695
  %v1458 = vpow.pop %v1457
  %v1459 = vmul.f32 %v1341, 1.442695
  %v1460 = vpow.pop %v1459
  %v1461 = vmul.f32 %v1342, 1.442695
  %v1462 = vpow.pop %v1461
  %v1463 = vmul.f32 %v1343, 1.442695
  %v1464 = vpow.pop %v1463
  %v1465 = vmul.f32 %v1344, 1.442695
  %v1466 = vpow.pop %v1465
  %v1467 = vmul.f32 %v1345, 1.442695
  %v1468 = vpow.pop %v1467
  %v1469 = vmul.f32 %v1346, 1.442695
  %v1470 = vpow.pop %v1469
  %v1471 = vmul.f32 %v1347, 1.442695
  %v1472 = vpow.pop %v1471
  %v1473 = vmul.f32 %v1348, 1.442695
  %v1474 = vpow.pop %v1473
  %v1475 = vmul.f32 %v1349, 1.442695
  %v1476 = vpow.pop %v1475
  %v1477 = vmul.f32 %v1350, 1.442695
  %v1478 = vpow.pop %v1477
  %v1479 = vsel %vm1094, %v1352, 0.0
  %1480 = vadd.xlane.f32.xlu0 %v1479
  %v1481 = vpop.xlane.xlu0 %1480
  %v1482 = vsel %vm1094, %v1354, 0.0
  %1483 = vadd.xlane.f32.xlu0 %v1482
  %v1484 = vpop.xlane.xlu0 %1483
  %v1485 = vsel %vm1094, %v1356, 0.0
  %1486 = vadd.xlane.f32.xlu0 %v1485
  %v1487 = vpop.xlane.xlu0 %1486
  %v1488 = vsel %vm1094, %v1358, 0.0
  %1489 = vadd.xlane.f32.xlu0 %v1488
  %v1490 = vpop.xlane.xlu0 %1489
  %v1491 = vsel %vm1094, %v1360, 0.0
  %1492 = vadd.xlane.f32.xlu0 %v1491
  %v1493 = vpop.xlane.xlu0 %1492
  %v1494 = vsel %vm1094, %v1362, 0.0
  %1495 = vadd.xlane.f32.xlu0 %v1494
  %v1496 = vpop.xlane.xlu0 %1495
  %v1497 = vsel %vm1094, %v1364, 0.0
  %1498 = vadd.xlane.f32.xlu0 %v1497
  %v1499 = vpop.xlane.xlu0 %1498
  %v1500 = vsel %vm1094, %v1366, 0.0
  %1501 = vadd.xlane.f32.xlu0 %v1500
  %v1502 = vpop.xlane.xlu0 %1501
  %v1503 = vsel %vm1094, %v1368, 0.0
  %1504 = vadd.xlane.f32.xlu0 %v1503
  %v1505 = vpop.xlane.xlu0 %1504
  %v1506 = vsel %vm1094, %v1370, 0.0
  %1507 = vadd.xlane.f32.xlu0 %v1506
  %v1508 = vpop.xlane.xlu0 %1507
  %v1509 = vsel %vm1094, %v1372, 0.0
  %1510 = vadd.xlane.f32.xlu0 %v1509
  %v1511 = vpop.xlane.xlu0 %1510
  %v1512 = vsel %vm1094, %v1374, 0.0
  %1513 = vadd.xlane.f32.xlu0 %v1512
  %v1514 = vpop.xlane.xlu0 %1513
  %v1515 = vsel %vm1094, %v1376, 0.0
  %1516 = vadd.xlane.f32.xlu0 %v1515
  %v1517 = vpop.xlane.xlu0 %1516
  %v1518 = vsel %vm1094, %v1378, 0.0
  %1519 = vadd.xlane.f32.xlu0 %v1518
  %v1520 = vpop.xlane.xlu0 %1519
  %v1521 = vsel %vm1094, %v1380, 0.0
  %1522 = vadd.xlane.f32.xlu0 %v1521
  %v1523 = vpop.xlane.xlu0 %1522
  %v1524 = vsel %vm1094, %v1382, 0.0
  %1525 = vadd.xlane.f32.xlu0 %v1524
  %v1526 = vpop.xlane.xlu0 %1525
  %v1527 = vsel %vm1094, %v1384, 0.0
  %1528 = vadd.xlane.f32.xlu0 %v1527
  %v1529 = vpop.xlane.xlu0 %1528
  %v1530 = vsel %vm1094, %v1386, 0.0
  %1531 = vadd.xlane.f32.xlu0 %v1530
  %v1532 = vpop.xlane.xlu0 %1531
  %v1533 = vsel %vm1094, %v1388, 0.0
  %1534 = vadd.xlane.f32.xlu0 %v1533
  %v1535 = vpop.xlane.xlu0 %1534
  %v1536 = vsel %vm1094, %v1390, 0.0
  %1537 = vadd.xlane.f32.xlu0 %v1536
  %v1538 = vpop.xlane.xlu0 %1537
  %v1539 = vsel %vm1094, %v1392, 0.0
  %1540 = vadd.xlane.f32.xlu0 %v1539
  %v1541 = vpop.xlane.xlu0 %1540
  %v1542 = vsel %vm1094, %v1394, 0.0
  %1543 = vadd.xlane.f32.xlu0 %v1542
  %v1544 = vpop.xlane.xlu0 %1543
  %v1545 = vsel %vm1094, %v1396, 0.0
  %1546 = vadd.xlane.f32.xlu0 %v1545
  %v1547 = vpop.xlane.xlu0 %1546
  %v1548 = vsel %vm1094, %v1398, 0.0
  %1549 = vadd.xlane.f32.xlu0 %v1548
  %v1550 = vpop.xlane.xlu0 %1549
  %v1551 = vsel %vm1094, %v1400, 0.0
  %1552 = vadd.xlane.f32.xlu0 %v1551
  %v1553 = vpop.xlane.xlu0 %1552
  %v1554 = vsel %vm1094, %v1402, 0.0
  %1555 = vadd.xlane.f32.xlu0 %v1554
  %v1556 = vpop.xlane.xlu0 %1555
  %v1557 = vsel %vm1094, %v1404, 0.0
  %1558 = vadd.xlane.f32.xlu0 %v1557
  %v1559 = vpop.xlane.xlu0 %1558
  %v1560 = vsel %vm1094, %v1406, 0.0
  %1561 = vadd.xlane.f32.xlu0 %v1560
  %v1562 = vpop.xlane.xlu0 %1561
  %v1563 = vsel %vm1094, %v1408, 0.0
  %1564 = vadd.xlane.f32.xlu0 %v1563
  %v1565 = vpop.xlane.xlu0 %1564
  %v1566 = vsel %vm1094, %v1410, 0.0
  %1567 = vadd.xlane.f32.xlu0 %v1566
  %v1568 = vpop.xlane.xlu0 %1567
  %v1569 = vsel %vm1094, %v1412, 0.0
  %1570 = vadd.xlane.f32.xlu0 %v1569
  %v1571 = vpop.xlane.xlu0 %1570
  %v1572 = vsel %vm1094, %v1414, 0.0
  %1573 = vadd.xlane.f32.xlu0 %v1572
  %v1574 = vpop.xlane.xlu0 %1573
  %v1575 = vsel %vm1094, %v1416, 0.0
  %1576 = vadd.xlane.f32.xlu0 %v1575
  %v1577 = vpop.xlane.xlu0 %1576
  %v1578 = vsel %vm1094, %v1418, 0.0
  %1579 = vadd.xlane.f32.xlu0 %v1578
  %v1580 = vpop.xlane.xlu0 %1579
  %v1581 = vsel %vm1094, %v1420, 0.0
  %1582 = vadd.xlane.f32.xlu0 %v1581
  %v1583 = vpop.xlane.xlu0 %1582
  %v1584 = vsel %vm1094, %v1422, 0.0
  %1585 = vadd.xlane.f32.xlu0 %v1584
  %v1586 = vpop.xlane.xlu0 %1585
  %v1587 = vsel %vm1094, %v1424, 0.0
  %1588 = vadd.xlane.f32.xlu0 %v1587
  %v1589 = vpop.xlane.xlu0 %1588
  %v1590 = vsel %vm1094, %v1426, 0.0
  %1591 = vadd.xlane.f32.xlu0 %v1590
  %v1592 = vpop.xlane.xlu0 %1591
  %v1593 = vsel %vm1094, %v1428, 0.0
  %1594 = vadd.xlane.f32.xlu0 %v1593
  %v1595 = vpop.xlane.xlu0 %1594
  %v1596 = vsel %vm1094, %v1430, 0.0
  %1597 = vadd.xlane.f32.xlu0 %v1596
  %v1598 = vpop.xlane.xlu0 %1597
  %v1599 = vsel %vm1094, %v1432, 0.0
  %1600 = vadd.xlane.f32.xlu0 %v1599
  %v1601 = vpop.xlane.xlu0 %1600
  %v1602 = vsel %vm1094, %v1434, 0.0
  %1603 = vadd.xlane.f32.xlu0 %v1602
  %v1604 = vpop.xlane.xlu0 %1603
  %v1605 = vsel %vm1094, %v1436, 0.0
  %1606 = vadd.xlane.f32.xlu0 %v1605
  %v1607 = vpop.xlane.xlu0 %1606
  %v1608 = vsel %vm1094, %v1438, 0.0
  %1609 = vadd.xlane.f32.xlu0 %v1608
  %v1610 = vpop.xlane.xlu0 %1609
  %v1611 = vsel %vm1094, %v1440, 0.0
  %1612 = vadd.xlane.f32.xlu0 %v1611
  %v1613 = vpop.xlane.xlu0 %1612
  %v1614 = vsel %vm1094, %v1442, 0.0
  %1615 = vadd.xlane.f32.xlu0 %v1614
  %v1616 = vpop.xlane.xlu0 %1615
  %v1617 = vsel %vm1094, %v1444, 0.0
  %1618 = vadd.xlane.f32.xlu0 %v1617
  %v1619 = vpop.xlane.xlu0 %1618
  %v1620 = vsel %vm1094, %v1446, 0.0
  %1621 = vadd.xlane.f32.xlu0 %v1620
  %v1622 = vpop.xlane.xlu0 %1621
  %v1623 = vsel %vm1094, %v1448, 0.0
  %1624 = vadd.xlane.f32.xlu0 %v1623
  %v1625 = vpop.xlane.xlu0 %1624
  %v1626 = vsel %vm1094, %v1450, 0.0
  %1627 = vadd.xlane.f32.xlu0 %v1626
  %v1628 = vpop.xlane.xlu0 %1627
  %v1629 = vsel %vm1094, %v1452, 0.0
  %1630 = vadd.xlane.f32.xlu0 %v1629
  %v1631 = vpop.xlane.xlu0 %1630
  %v1632 = vsel %vm1094, %v1454, 0.0
  %1633 = vadd.xlane.f32.xlu0 %v1632
  %v1634 = vpop.xlane.xlu0 %1633
  %v1635 = vsel %vm1094, %v1456, 0.0
  %1636 = vadd.xlane.f32.xlu0 %v1635
  %v1637 = vpop.xlane.xlu0 %1636
  %v1638 = vsel %vm1094, %v1458, 0.0
  %1639 = vadd.xlane.f32.xlu0 %v1638
  %v1640 = vpop.xlane.xlu0 %1639
  %v1641 = vsel %vm1094, %v1460, 0.0
  %1642 = vadd.xlane.f32.xlu0 %v1641
  %v1643 = vpop.xlane.xlu0 %1642
  %v1644 = vsel %vm1094, %v1462, 0.0
  %1645 = vadd.xlane.f32.xlu0 %v1644
  %v1646 = vpop.xlane.xlu0 %1645
  %v1647 = vsel %vm1094, %v1464, 0.0
  %1648 = vadd.xlane.f32.xlu0 %v1647
  %v1649 = vpop.xlane.xlu0 %1648
  %v1650 = vsel %vm1094, %v1466, 0.0
  %1651 = vadd.xlane.f32.xlu0 %v1650
  %v1652 = vpop.xlane.xlu0 %1651
  %v1653 = vsel %vm1094, %v1468, 0.0
  %1654 = vadd.xlane.f32.xlu0 %v1653
  %v1655 = vpop.xlane.xlu0 %1654
  %v1656 = vsel %vm1094, %v1470, 0.0
  %1657 = vadd.xlane.f32.xlu0 %v1656
  %v1658 = vpop.xlane.xlu0 %1657
  %v1659 = vsel %vm1094, %v1472, 0.0
  %1660 = vadd.xlane.f32.xlu0 %v1659
  %v1661 = vpop.xlane.xlu0 %1660
  %v1662 = vsel %vm1094, %v1474, 0.0
  %1663 = vadd.xlane.f32.xlu0 %v1662
  %v1664 = vpop.xlane.xlu0 %1663
  %v1665 = vsel %vm1094, %v1476, 0.0
  %1666 = vadd.xlane.f32.xlu0 %v1665
  %v1667 = vpop.xlane.xlu0 %1666
  %v1668 = vsel %vm1094, %v1478, 0.0
  %1669 = vadd.xlane.f32.xlu0 %v1668
  %v1670 = vpop.xlane.xlu0 %1669
  %v1671 = vlaneseq
  %v1672 = vshrl.u32 %v1671, 7
  %v1673 = vsub.s32 0, %v1672
  %v1674 = vrot.slane %v656, %v1673
  %1676 = vbcast.lane.b32.xlu0 %v1674, 256
  %v1677 = vpop.permute.xlu0 %1676
  %s1679 = sor.u32 256, 8
  %1680 = vbcast.lane.b32.xlu0 %v1674, %s1679
  %v1681 = vpop.permute.xlu0 %1680
  %s1683 = sor.u32 256, 16
  %1684 = vbcast.lane.b32.xlu0 %v1674, %s1683
  %v1685 = vpop.permute.xlu0 %1684
  %s1687 = sor.u32 256, 24
  %1688 = vbcast.lane.b32.xlu0 %v1674, %s1687
  %v1689 = vpop.permute.xlu0 %1688
  %s1691 = sor.u32 256, 32
  %1692 = vbcast.lane.b32.xlu0 %v1674, %s1691
  %v1693 = vpop.permute.xlu0 %1692
  %s1695 = sor.u32 256, 40
  %1696 = vbcast.lane.b32.xlu0 %v1674, %s1695
  %v1697 = vpop.permute.xlu0 %1696
  %s1699 = sor.u32 256, 48
  %1700 = vbcast.lane.b32.xlu0 %v1674, %s1699
  %v1701 = vpop.permute.xlu0 %1700
  %s1703 = sor.u32 256, 56
  %1704 = vbcast.lane.b32.xlu0 %v1674, %s1703
  %v1705 = vpop.permute.xlu0 %1704
  %v1706 = vlaneseq
  %v1707 = vshrl.u32 %v1706, 7
  %v1708 = vsub.s32 1, %v1707
  %v1709 = vrot.slane %v656, %v1708
  %1711 = vbcast.lane.b32.xlu0 %v1709, 256
  %v1712 = vpop.permute.xlu0 %1711
  %s1714 = sor.u32 256, 8
  %1715 = vbcast.lane.b32.xlu0 %v1709, %s1714
  %v1716 = vpop.permute.xlu0 %1715
  %s1718 = sor.u32 256, 16
  %1719 = vbcast.lane.b32.xlu0 %v1709, %s1718
  %v1720 = vpop.permute.xlu0 %1719
  %s1722 = sor.u32 256, 24
  %1723 = vbcast.lane.b32.xlu0 %v1709, %s1722
  %v1724 = vpop.permute.xlu0 %1723
  %s1726 = sor.u32 256, 32
  %1727 = vbcast.lane.b32.xlu0 %v1709, %s1726
  %v1728 = vpop.permute.xlu0 %1727
  %s1730 = sor.u32 256, 40
  %1731 = vbcast.lane.b32.xlu0 %v1709, %s1730
  %v1732 = vpop.permute.xlu0 %1731
  %s1734 = sor.u32 256, 48
  %1735 = vbcast.lane.b32.xlu0 %v1709, %s1734
  %v1736 = vpop.permute.xlu0 %1735
  %s1738 = sor.u32 256, 56
  %1739 = vbcast.lane.b32.xlu0 %v1709, %s1738
  %v1740 = vpop.permute.xlu0 %1739
  %v1741 = vlaneseq
  %v1742 = vshrl.u32 %v1741, 7
  %v1743 = vsub.s32 2, %v1742
  %v1744 = vrot.slane %v656, %v1743
  %1746 = vbcast.lane.b32.xlu0 %v1744, 256
  %v1747 = vpop.permute.xlu0 %1746
  %s1749 = sor.u32 256, 8
  %1750 = vbcast.lane.b32.xlu0 %v1744, %s1749
  %v1751 = vpop.permute.xlu0 %1750
  %s1753 = sor.u32 256, 16
  %1754 = vbcast.lane.b32.xlu0 %v1744, %s1753
  %v1755 = vpop.permute.xlu0 %1754
  %s1757 = sor.u32 256, 24
  %1758 = vbcast.lane.b32.xlu0 %v1744, %s1757
  %v1759 = vpop.permute.xlu0 %1758
  %s1761 = sor.u32 256, 32
  %1762 = vbcast.lane.b32.xlu0 %v1744, %s1761
  %v1763 = vpop.permute.xlu0 %1762
  %s1765 = sor.u32 256, 40
  %1766 = vbcast.lane.b32.xlu0 %v1744, %s1765
  %v1767 = vpop.permute.xlu0 %1766
  %s1769 = sor.u32 256, 48
  %1770 = vbcast.lane.b32.xlu0 %v1744, %s1769
  %v1771 = vpop.permute.xlu0 %1770
  %s1773 = sor.u32 256, 56
  %1774 = vbcast.lane.b32.xlu0 %v1744, %s1773
  %v1775 = vpop.permute.xlu0 %1774
  %v1776 = vlaneseq
  %v1777 = vshrl.u32 %v1776, 7
  %v1778 = vsub.s32 3, %v1777
  %v1779 = vrot.slane %v656, %v1778
  %1781 = vbcast.lane.b32.xlu0 %v1779, 256
  %v1782 = vpop.permute.xlu0 %1781
  %s1784 = sor.u32 256, 8
  %1785 = vbcast.lane.b32.xlu0 %v1779, %s1784
  %v1786 = vpop.permute.xlu0 %1785
  %s1788 = sor.u32 256, 16
  %1789 = vbcast.lane.b32.xlu0 %v1779, %s1788
  %v1790 = vpop.permute.xlu0 %1789
  %s1792 = sor.u32 256, 24
  %1793 = vbcast.lane.b32.xlu0 %v1779, %s1792
  %v1794 = vpop.permute.xlu0 %1793
  %s1796 = sor.u32 256, 32
  %1797 = vbcast.lane.b32.xlu0 %v1779, %s1796
  %v1798 = vpop.permute.xlu0 %1797
  %s1800 = sor.u32 256, 40
  %1801 = vbcast.lane.b32.xlu0 %v1779, %s1800
  %v1802 = vpop.permute.xlu0 %1801
  %s1804 = sor.u32 256, 48
  %1805 = vbcast.lane.b32.xlu0 %v1779, %s1804
  %v1806 = vpop.permute.xlu0 %1805
  %s1808 = sor.u32 256, 56
  %1809 = vbcast.lane.b32.xlu0 %v1779, %s1808
  %v1810 = vpop.permute.xlu0 %1809
  %v1811 = vlaneseq
  %v1812 = vshrl.u32 %v1811, 7
  %v1813 = vsub.s32 4, %v1812
  %v1814 = vrot.slane %v656, %v1813
  %1816 = vbcast.lane.b32.xlu0 %v1814, 256
  %v1817 = vpop.permute.xlu0 %1816
  %s1819 = sor.u32 256, 8
  %1820 = vbcast.lane.b32.xlu0 %v1814, %s1819
  %v1821 = vpop.permute.xlu0 %1820
  %s1823 = sor.u32 256, 16
  %1824 = vbcast.lane.b32.xlu0 %v1814, %s1823
  %v1825 = vpop.permute.xlu0 %1824
  %s1827 = sor.u32 256, 24
  %1828 = vbcast.lane.b32.xlu0 %v1814, %s1827
  %v1829 = vpop.permute.xlu0 %1828
  %s1831 = sor.u32 256, 32
  %1832 = vbcast.lane.b32.xlu0 %v1814, %s1831
  %v1833 = vpop.permute.xlu0 %1832
  %s1835 = sor.u32 256, 40
  %1836 = vbcast.lane.b32.xlu0 %v1814, %s1835
  %v1837 = vpop.permute.xlu0 %1836
  %s1839 = sor.u32 256, 48
  %1840 = vbcast.lane.b32.xlu0 %v1814, %s1839
  %v1841 = vpop.permute.xlu0 %1840
  %s1843 = sor.u32 256, 56
  %1844 = vbcast.lane.b32.xlu0 %v1814, %s1843
  %v1845 = vpop.permute.xlu0 %1844
  %v1846 = vlaneseq
  %v1847 = vshrl.u32 %v1846, 7
  %v1848 = vsub.s32 5, %v1847
  %v1849 = vrot.slane %v656, %v1848
  %1851 = vbcast.lane.b32.xlu0 %v1849, 256
  %v1852 = vpop.permute.xlu0 %1851
  %s1854 = sor.u32 256, 8
  %1855 = vbcast.lane.b32.xlu0 %v1849, %s1854
  %v1856 = vpop.permute.xlu0 %1855
  %s1858 = sor.u32 256, 16
  %1859 = vbcast.lane.b32.xlu0 %v1849, %s1858
  %v1860 = vpop.permute.xlu0 %1859
  %s1862 = sor.u32 256, 24
  %1863 = vbcast.lane.b32.xlu0 %v1849, %s1862
  %v1864 = vpop.permute.xlu0 %1863
  %s1866 = sor.u32 256, 32
  %1867 = vbcast.lane.b32.xlu0 %v1849, %s1866
  %v1868 = vpop.permute.xlu0 %1867
  %s1870 = sor.u32 256, 40
  %1871 = vbcast.lane.b32.xlu0 %v1849, %s1870
  %v1872 = vpop.permute.xlu0 %1871
  %s1874 = sor.u32 256, 48
  %1875 = vbcast.lane.b32.xlu0 %v1849, %s1874
  %v1876 = vpop.permute.xlu0 %1875
  %s1878 = sor.u32 256, 56
  %1879 = vbcast.lane.b32.xlu0 %v1849, %s1878
  %v1880 = vpop.permute.xlu0 %1879
  %v1881 = vlaneseq
  %v1882 = vshrl.u32 %v1881, 7
  %v1883 = vsub.s32 6, %v1882
  %v1884 = vrot.slane %v656, %v1883
  %1886 = vbcast.lane.b32.xlu0 %v1884, 256
  %v1887 = vpop.permute.xlu0 %1886
  %s1889 = sor.u32 256, 8
  %1890 = vbcast.lane.b32.xlu0 %v1884, %s1889
  %v1891 = vpop.permute.xlu0 %1890
  %s1893 = sor.u32 256, 16
  %1894 = vbcast.lane.b32.xlu0 %v1884, %s1893
  %v1895 = vpop.permute.xlu0 %1894
  %s1897 = sor.u32 256, 24
  %1898 = vbcast.lane.b32.xlu0 %v1884, %s1897
  %v1899 = vpop.permute.xlu0 %1898
  %s1901 = sor.u32 256, 32
  %1902 = vbcast.lane.b32.xlu0 %v1884, %s1901
  %v1903 = vpop.permute.xlu0 %1902
  %s1905 = sor.u32 256, 40
  %1906 = vbcast.lane.b32.xlu0 %v1884, %s1905
  %v1907 = vpop.permute.xlu0 %1906
  %s1909 = sor.u32 256, 48
  %1910 = vbcast.lane.b32.xlu0 %v1884, %s1909
  %v1911 = vpop.permute.xlu0 %1910
  %s1913 = sor.u32 256, 56
  %1914 = vbcast.lane.b32.xlu0 %v1884, %s1913
  %v1915 = vpop.permute.xlu0 %1914
  %v1916 = vlaneseq
  %v1917 = vshrl.u32 %v1916, 7
  %v1918 = vsub.s32 7, %v1917
  %v1919 = vrot.slane %v656, %v1918
  %1921 = vbcast.lane.b32.xlu0 %v1919, 256
  %v1922 = vpop.permute.xlu0 %1921
  %s1924 = sor.u32 256, 8
  %1925 = vbcast.lane.b32.xlu0 %v1919, %s1924
  %v1926 = vpop.permute.xlu0 %1925
  %s1928 = sor.u32 256, 16
  %1929 = vbcast.lane.b32.xlu0 %v1919, %s1928
  %v1930 = vpop.permute.xlu0 %1929
  %s1932 = sor.u32 256, 24
  %1933 = vbcast.lane.b32.xlu0 %v1919, %s1932
  %v1934 = vpop.permute.xlu0 %1933
  %s1936 = sor.u32 256, 32
  %1937 = vbcast.lane.b32.xlu0 %v1919, %s1936
  %v1938 = vpop.permute.xlu0 %1937
  %s1940 = sor.u32 256, 40
  %1941 = vbcast.lane.b32.xlu0 %v1919, %s1940
  %v1942 = vpop.permute.xlu0 %1941
  %s1944 = sor.u32 256, 48
  %1945 = vbcast.lane.b32.xlu0 %v1919, %s1944
  %v1946 = vpop.permute.xlu0 %1945
  %s1948 = sor.u32 256, 56
  %1949 = vbcast.lane.b32.xlu0 %v1919, %s1948
  %v1950 = vpop.permute.xlu0 %1949
  %v1951 = vrcp.pop %v1481
  %v1952 = vmul.f32 %v1677, %v1951
  %v1953 = vrcp.pop %v1484
  %v1954 = vmul.f32 %v1681, %v1953
  %v1955 = vrcp.pop %v1487
  %v1956 = vmul.f32 %v1685, %v1955
  %v1957 = vrcp.pop %v1490
  %v1958 = vmul.f32 %v1689, %v1957
  %v1959 = vrcp.pop %v1493
  %v1960 = vmul.f32 %v1693, %v1959
  %v1961 = vrcp.pop %v1496
  %v1962 = vmul.f32 %v1697, %v1961
  %v1963 = vrcp.pop %v1499
  %v1964 = vmul.f32 %v1701, %v1963
  %v1965 = vrcp.pop %v1502
  %v1966 = vmul.f32 %v1705, %v1965
  %v1967 = vrcp.pop %v1505
  %v1968 = vmul.f32 %v1712, %v1967
  %v1969 = vrcp.pop %v1508
  %v1970 = vmul.f32 %v1716, %v1969
  %v1971 = vrcp.pop %v1511
  %v1972 = vmul.f32 %v1720, %v1971
  %v1973 = vrcp.pop %v1514
  %v1974 = vmul.f32 %v1724, %v1973
  %v1975 = vrcp.pop %v1517
  %v1976 = vmul.f32 %v1728, %v1975
  %v1977 = vrcp.pop %v1520
  %v1978 = vmul.f32 %v1732, %v1977
  %v1979 = vrcp.pop %v1523
  %v1980 = vmul.f32 %v1736, %v1979
  %v1981 = vrcp.pop %v1526
  %v1982 = vmul.f32 %v1740, %v1981
  %v1983 = vrcp.pop %v1529
  %v1984 = vmul.f32 %v1747, %v1983
  %v1985 = vrcp.pop %v1532
  %v1986 = vmul.f32 %v1751, %v1985
  %v1987 = vrcp.pop %v1535
  %v1988 = vmul.f32 %v1755, %v1987
  %v1989 = vrcp.pop %v1538
  %v1990 = vmul.f32 %v1759, %v1989
  %v1991 = vrcp.pop %v1541
  %v1992 = vmul.f32 %v1763, %v1991
  %v1993 = vrcp.pop %v1544
  %v1994 = vmul.f32 %v1767, %v1993
  %v1995 = vrcp.pop %v1547
  %v1996 = vmul.f32 %v1771, %v1995
  %v1997 = vrcp.pop %v1550
  %v1998 = vmul.f32 %v1775, %v1997
  %v1999 = vrcp.pop %v1553
  %v2000 = vmul.f32 %v1782, %v1999
  %v2001 = vrcp.pop %v1556
  %v2002 = vmul.f32 %v1786, %v2001
  %v2003 = vrcp.pop %v1559
  %v2004 = vmul.f32 %v1790, %v2003
  %v2005 = vrcp.pop %v1562
  %v2006 = vmul.f32 %v1794, %v2005
  %v2007 = vrcp.pop %v1565
  %v2008 = vmul.f32 %v1798, %v2007
  %v2009 = vrcp.pop %v1568
  %v2010 = vmul.f32 %v1802, %v2009
  %v2011 = vrcp.pop %v1571
  %v2012 = vmul.f32 %v1806, %v2011
  %v2013 = vrcp.pop %v1574
  %v2014 = vmul.f32 %v1810, %v2013
  %v2015 = vrcp.pop %v1577
  %v2016 = vmul.f32 %v1817, %v2015
  %v2017 = vrcp.pop %v1580
  %v2018 = vmul.f32 %v1821, %v2017
  %v2019 = vrcp.pop %v1583
  %v2020 = vmul.f32 %v1825, %v2019
  %v2021 = vrcp.pop %v1586
  %v2022 = vmul.f32 %v1829, %v2021
  %v2023 = vrcp.pop %v1589
  %v2024 = vmul.f32 %v1833, %v2023
  %v2025 = vrcp.pop %v1592
  %v2026 = vmul.f32 %v1837, %v2025
  %v2027 = vrcp.pop %v1595
  %v2028 = vmul.f32 %v1841, %v2027
  %v2029 = vrcp.pop %v1598
  %v2030 = vmul.f32 %v1845, %v2029
  %v2031 = vrcp.pop %v1601
  %v2032 = vmul.f32 %v1852, %v2031
  %v2033 = vrcp.pop %v1604
  %v2034 = vmul.f32 %v1856, %v2033
  %v2035 = vrcp.pop %v1607
  %v2036 = vmul.f32 %v1860, %v2035
  %v2037 = vrcp.pop %v1610
  %v2038 = vmul.f32 %v1864, %v2037
  %v2039 = vrcp.pop %v1613
  %v2040 = vmul.f32 %v1868, %v2039
  %v2041 = vrcp.pop %v1616
  %v2042 = vmul.f32 %v1872, %v2041
  %v2043 = vrcp.pop %v1619
  %v2044 = vmul.f32 %v1876, %v2043
  %v2045 = vrcp.pop %v1622
  %v2046 = vmul.f32 %v1880, %v2045
  %v2047 = vrcp.pop %v1625
  %v2048 = vmul.f32 %v1887, %v2047
  %v2049 = vrcp.pop %v1628
  %v2050 = vmul.f32 %v1891, %v2049
  %v2051 = vrcp.pop %v1631
  %v2052 = vmul.f32 %v1895, %v2051
  %v2053 = vrcp.pop %v1634
  %v2054 = vmul.f32 %v1899, %v2053
  %v2055 = vrcp.pop %v1637
  %v2056 = vmul.f32 %v1903, %v2055
  %v2057 = vrcp.pop %v1640
  %v2058 = vmul.f32 %v1907, %v2057
  %v2059 = vrcp.pop %v1643
  %v2060 = vmul.f32 %v1911, %v2059
  %v2061 = vrcp.pop %v1646
  %v2062 = vmul.f32 %v1915, %v2061
  %v2063 = vrcp.pop %v1649
  %v2064 = vmul.f32 %v1922, %v2063
  %v2065 = vrcp.pop %v1652
  %v2066 = vmul.f32 %v1926, %v2065
  %v2067 = vrcp.pop %v1655
  %v2068 = vmul.f32 %v1930, %v2067
  %v2069 = vrcp.pop %v1658
  %v2070 = vmul.f32 %v1934, %v2069
  %v2071 = vrcp.pop %v1661
  %v2072 = vmul.f32 %v1938, %v2071
  %v2073 = vrcp.pop %v1664
  %v2074 = vmul.f32 %v1942, %v2073
  %v2075 = vrcp.pop %v1667
  %v2076 = vmul.f32 %v1946, %v2075
  %v2077 = vrcp.pop %v1670
  %v2078 = vmul.f32 %v1950, %v2077
  %v2079 = vmul.f32 %v1952, %v1352
  %v2080 = vmul.f32 %v1954, %v1354
  %v2081 = vmul.f32 %v1956, %v1356
  %v2082 = vmul.f32 %v1958, %v1358
  %v2083 = vmul.f32 %v1960, %v1360
  %v2084 = vmul.f32 %v1962, %v1362
  %v2085 = vmul.f32 %v1964, %v1364
  %v2086 = vmul.f32 %v1966, %v1366
  %v2087 = vmul.f32 %v1968, %v1368
  %v2088 = vmul.f32 %v1970, %v1370
  %v2089 = vmul.f32 %v1972, %v1372
  %v2090 = vmul.f32 %v1974, %v1374
  %v2091 = vmul.f32 %v1976, %v1376
  %v2092 = vmul.f32 %v1978, %v1378
  %v2093 = vmul.f32 %v1980, %v1380
  %v2094 = vmul.f32 %v1982, %v1382
  %v2095 = vmul.f32 %v1984, %v1384
  %v2096 = vmul.f32 %v1986, %v1386
  %v2097 = vmul.f32 %v1988, %v1388
  %v2098 = vmul.f32 %v1990, %v1390
  %v2099 = vmul.f32 %v1992, %v1392
  %v2100 = vmul.f32 %v1994, %v1394
  %v2101 = vmul.f32 %v1996, %v1396
  %v2102 = vmul.f32 %v1998, %v1398
  %v2103 = vmul.f32 %v2000, %v1400
  %v2104 = vmul.f32 %v2002, %v1402
  %v2105 = vmul.f32 %v2004, %v1404
  %v2106 = vmul.f32 %v2006, %v1406
  %v2107 = vmul.f32 %v2008, %v1408
  %v2108 = vmul.f32 %v2010, %v1410
  %v2109 = vmul.f32 %v2012, %v1412
  %v2110 = vmul.f32 %v2014, %v1414
  %v2111 = vmul.f32 %v2016, %v1416
  %v2112 = vmul.f32 %v2018, %v1418
  %v2113 = vmul.f32 %v2020, %v1420
  %v2114 = vmul.f32 %v2022, %v1422
  %v2115 = vmul.f32 %v2024, %v1424
  %v2116 = vmul.f32 %v2026, %v1426
  %v2117 = vmul.f32 %v2028, %v1428
  %v2118 = vmul.f32 %v2030, %v1430
  %v2119 = vmul.f32 %v2032, %v1432
  %v2120 = vmul.f32 %v2034, %v1434
  %v2121 = vmul.f32 %v2036, %v1436
  %v2122 = vmul.f32 %v2038, %v1438
  %v2123 = vmul.f32 %v2040, %v1440
  %v2124 = vmul.f32 %v2042, %v1442
  %v2125 = vmul.f32 %v2044, %v1444
  %v2126 = vmul.f32 %v2046, %v1446
  %v2127 = vmul.f32 %v2048, %v1448
  %v2128 = vmul.f32 %v2050, %v1450
  %v2129 = vmul.f32 %v2052, %v1452
  %v2130 = vmul.f32 %v2054, %v1454
  %v2131 = vmul.f32 %v2056, %v1456
  %v2132 = vmul.f32 %v2058, %v1458
  %v2133 = vmul.f32 %v2060, %v1460
  %v2134 = vmul.f32 %v2062, %v1462
  %v2135 = vmul.f32 %v2064, %v1464
  %v2136 = vmul.f32 %v2066, %v1466
  %v2137 = vmul.f32 %v2068, %v1468
  %v2138 = vmul.f32 %v2070, %v1470
  %v2139 = vmul.f32 %v2072, %v1472
  %v2140 = vmul.f32 %v2074, %v1474
  %v2141 = vmul.f32 %v2076, %v1476
  %v2142 = vmul.f32 %v2078, %v1478
  %v2143 = vsel %vm1094, %v2079, 0.0
  %v2144 = vsel %vm1094, %v2080, 0.0
  %v2145 = vadd.f32 %v2143, %v2144
  %v2146 = vsel %vm1094, %v2081, 0.0
  %v2147 = vadd.f32 %v2145, %v2146
  %v2148 = vsel %vm1094, %v2082, 0.0
  %v2149 = vadd.f32 %v2147, %v2148
  %v2150 = vsel %vm1094, %v2083, 0.0
  %v2151 = vadd.f32 %v2149, %v2150
  %v2152 = vsel %vm1094, %v2084, 0.0
  %v2153 = vadd.f32 %v2151, %v2152
  %v2154 = vsel %vm1094, %v2085, 0.0
  %v2155 = vadd.f32 %v2153, %v2154
  %v2156 = vsel %vm1094, %v2086, 0.0
  %v2157 = vadd.f32 %v2155, %v2156
  %v2158 = vrot.slane %v2157, 4
  %v2159 = vadd.f32 %v2157, %v2158
  %v2160 = vrot.slane %v2159, 2
  %v2161 = vadd.f32 %v2159, %v2160
  %v2162 = vrot.slane %v2161, 1
  %v2163 = vadd.f32 %v2161, %v2162
  %v2164 = vsel %vm1094, %v2087, 0.0
  %v2165 = vsel %vm1094, %v2088, 0.0
  %v2166 = vadd.f32 %v2164, %v2165
  %v2167 = vsel %vm1094, %v2089, 0.0
  %v2168 = vadd.f32 %v2166, %v2167
  %v2169 = vsel %vm1094, %v2090, 0.0
  %v2170 = vadd.f32 %v2168, %v2169
  %v2171 = vsel %vm1094, %v2091, 0.0
  %v2172 = vadd.f32 %v2170, %v2171
  %v2173 = vsel %vm1094, %v2092, 0.0
  %v2174 = vadd.f32 %v2172, %v2173
  %v2175 = vsel %vm1094, %v2093, 0.0
  %v2176 = vadd.f32 %v2174, %v2175
  %v2177 = vsel %vm1094, %v2094, 0.0
  %v2178 = vadd.f32 %v2176, %v2177
  %v2179 = vrot.slane %v2178, 4
  %v2180 = vadd.f32 %v2178, %v2179
  %v2181 = vrot.slane %v2180, 2
  %v2182 = vadd.f32 %v2180, %v2181
  %v2183 = vrot.slane %v2182, 1
  %v2184 = vadd.f32 %v2182, %v2183
  %v2185 = vsel %vm1094, %v2095, 0.0
  %v2186 = vsel %vm1094, %v2096, 0.0
  %v2187 = vadd.f32 %v2185, %v2186
  %v2188 = vsel %vm1094, %v2097, 0.0
  %v2189 = vadd.f32 %v2187, %v2188
  %v2190 = vsel %vm1094, %v2098, 0.0
  %v2191 = vadd.f32 %v2189, %v2190
  %v2192 = vsel %vm1094, %v2099, 0.0
  %v2193 = vadd.f32 %v2191, %v2192
  %v2194 = vsel %vm1094, %v2100, 0.0
  %v2195 = vadd.f32 %v2193, %v2194
  %v2196 = vsel %vm1094, %v2101, 0.0
  %v2197 = vadd.f32 %v2195, %v2196
  %v2198 = vsel %vm1094, %v2102, 0.0
  %v2199 = vadd.f32 %v2197, %v2198
  %v2200 = vrot.slane %v2199, 4
  %v2201 = vadd.f32 %v2199, %v2200
  %v2202 = vrot.slane %v2201, 2
  %v2203 = vadd.f32 %v2201, %v2202
  %v2204 = vrot.slane %v2203, 1
  %v2205 = vadd.f32 %v2203, %v2204
  %v2206 = vsel %vm1094, %v2103, 0.0
  %v2207 = vsel %vm1094, %v2104, 0.0
  %v2208 = vadd.f32 %v2206, %v2207
  %v2209 = vsel %vm1094, %v2105, 0.0
  %v2210 = vadd.f32 %v2208, %v2209
  %v2211 = vsel %vm1094, %v2106, 0.0
  %v2212 = vadd.f32 %v2210, %v2211
  %v2213 = vsel %vm1094, %v2107, 0.0
  %v2214 = vadd.f32 %v2212, %v2213
  %v2215 = vsel %vm1094, %v2108, 0.0
  %v2216 = vadd.f32 %v2214, %v2215
  %v2217 = vsel %vm1094, %v2109, 0.0
  %v2218 = vadd.f32 %v2216, %v2217
  %v2219 = vsel %vm1094, %v2110, 0.0
  %v2220 = vadd.f32 %v2218, %v2219
  %v2221 = vrot.slane %v2220, 4
  %v2222 = vadd.f32 %v2220, %v2221
  %v2223 = vrot.slane %v2222, 2
  %v2224 = vadd.f32 %v2222, %v2223
  %v2225 = vrot.slane %v2224, 1
  %v2226 = vadd.f32 %v2224, %v2225
  %v2227 = vsel %vm1094, %v2111, 0.0
  %v2228 = vsel %vm1094, %v2112, 0.0
  %v2229 = vadd.f32 %v2227, %v2228
  %v2230 = vsel %vm1094, %v2113, 0.0
  %v2231 = vadd.f32 %v2229, %v2230
  %v2232 = vsel %vm1094, %v2114, 0.0
  %v2233 = vadd.f32 %v2231, %v2232
  %v2234 = vsel %vm1094, %v2115, 0.0
  %v2235 = vadd.f32 %v2233, %v2234
  %v2236 = vsel %vm1094, %v2116, 0.0
  %v2237 = vadd.f32 %v2235, %v2236
  %v2238 = vsel %vm1094, %v2117, 0.0
  %v2239 = vadd.f32 %v2237, %v2238
  %v2240 = vsel %vm1094, %v2118, 0.0
  %v2241 = vadd.f32 %v2239, %v2240
  %v2242 = vrot.slane %v2241, 4
  %v2243 = vadd.f32 %v2241, %v2242
  %v2244 = vrot.slane %v2243, 2
  %v2245 = vadd.f32 %v2243, %v2244
  %v2246 = vrot.slane %v2245, 1
  %v2247 = vadd.f32 %v2245, %v2246
  %v2248 = vsel %vm1094, %v2119, 0.0
  %v2249 = vsel %vm1094, %v2120, 0.0
  %v2250 = vadd.f32 %v2248, %v2249
  %v2251 = vsel %vm1094, %v2121, 0.0
  %v2252 = vadd.f32 %v2250, %v2251
  %v2253 = vsel %vm1094, %v2122, 0.0
  %v2254 = vadd.f32 %v2252, %v2253
  %v2255 = vsel %vm1094, %v2123, 0.0
  %v2256 = vadd.f32 %v2254, %v2255
  %v2257 = vsel %vm1094, %v2124, 0.0
  %v2258 = vadd.f32 %v2256, %v2257
  %v2259 = vsel %vm1094, %v2125, 0.0
  %v2260 = vadd.f32 %v2258, %v2259
  %v2261 = vsel %vm1094, %v2126, 0.0
  %v2262 = vadd.f32 %v2260, %v2261
  %v2263 = vrot.slane %v2262, 4
  %v2264 = vadd.f32 %v2262, %v2263
  %v2265 = vrot.slane %v2264, 2
  %v2266 = vadd.f32 %v2264, %v2265
  %v2267 = vrot.slane %v2266, 1
  %v2268 = vadd.f32 %v2266, %v2267
  %v2269 = vsel %vm1094, %v2127, 0.0
  %v2270 = vsel %vm1094, %v2128, 0.0
  %v2271 = vadd.f32 %v2269, %v2270
  %v2272 = vsel %vm1094, %v2129, 0.0
  %v2273 = vadd.f32 %v2271, %v2272
  %v2274 = vsel %vm1094, %v2130, 0.0
  %v2275 = vadd.f32 %v2273, %v2274
  %v2276 = vsel %vm1094, %v2131, 0.0
  %v2277 = vadd.f32 %v2275, %v2276
  %v2278 = vsel %vm1094, %v2132, 0.0
  %v2279 = vadd.f32 %v2277, %v2278
  %v2280 = vsel %vm1094, %v2133, 0.0
  %v2281 = vadd.f32 %v2279, %v2280
  %v2282 = vsel %vm1094, %v2134, 0.0
  %v2283 = vadd.f32 %v2281, %v2282
  %v2284 = vrot.slane %v2283, 4
  %v2285 = vadd.f32 %v2283, %v2284
  %v2286 = vrot.slane %v2285, 2
  %v2287 = vadd.f32 %v2285, %v2286
  %v2288 = vrot.slane %v2287, 1
  %v2289 = vadd.f32 %v2287, %v2288
  %v2290 = vsel %vm1094, %v2135, 0.0
  %v2291 = vsel %vm1094, %v2136, 0.0
  %v2292 = vadd.f32 %v2290, %v2291
  %v2293 = vsel %vm1094, %v2137, 0.0
  %v2294 = vadd.f32 %v2292, %v2293
  %v2295 = vsel %vm1094, %v2138, 0.0
  %v2296 = vadd.f32 %v2294, %v2295
  %v2297 = vsel %vm1094, %v2139, 0.0
  %v2298 = vadd.f32 %v2296, %v2297
  %v2299 = vsel %vm1094, %v2140, 0.0
  %v2300 = vadd.f32 %v2298, %v2299
  %v2301 = vsel %vm1094, %v2141, 0.0
  %v2302 = vadd.f32 %v2300, %v2301
  %v2303 = vsel %vm1094, %v2142, 0.0
  %v2304 = vadd.f32 %v2302, %v2303
  %v2305 = vrot.slane %v2304, 4
  %v2306 = vadd.f32 %v2304, %v2305
  %v2307 = vrot.slane %v2306, 2
  %v2308 = vadd.f32 %v2306, %v2307
  %v2309 = vrot.slane %v2308, 1
  %v2310 = vadd.f32 %v2308, %v2309
  %v2311 = vld [vmem:[%s11] sm:$0xff]
  %v2312 = vld [vmem:[%s11 + $0x8] sm:$0xff]
  %v2313 = vld [vmem:[%s11 + $0x10] sm:$0xff]
  %v2314 = vld [vmem:[%s11 + $0x18] sm:$0xff]
  %v2315 = vld [vmem:[%s11 + $0x20] sm:$0xff]
  %v2316 = vld [vmem:[%s11 + $0x28] sm:$0xff]
  %v2317 = vld [vmem:[%s11 + $0x30] sm:$0xff]
  %v2318 = vld [vmem:[%s11 + $0x38] sm:$0xff]
  %v2319 = vld [vmem:[%s12] sm:$0x1]
  %v2321 = vlaneseq
  %v2322 = vshrl.u32 %v2321, 7
  %v2323 = vsub.s32 0, %v2322
  %v2324 = vrot.slane %v2319, %v2323
  %vm2334 = vcmask 1041409
  %v2335 = vsel %vm2334, %v2184, %v2163
  %vm2336 = vcmask 1042434
  %v2337 = vsel %vm2336, %v2205, %v2335
  %vm2338 = vcmask 1043459
  %v2339 = vsel %vm2338, %v2226, %v2337
  %vm2340 = vcmask 1044484
  %v2341 = vsel %vm2340, %v2247, %v2339
  %vm2342 = vcmask 1045509
  %v2343 = vsel %vm2342, %v2268, %v2341
  %vm2344 = vcmask 1046534
  %v2345 = vsel %vm2344, %v2289, %v2343
  %vm2346 = vcmask 1047559
  %v2347 = vsel %vm2346, %v2310, %v2345
  %v2348 = vsel %vm1094, %v2347, 0
  %2350 = vmatprep.subr.mxu0 0.0
  %2351 = vmatpush1.msra.mxu0 %v2311
  %2352 = vmatprep.subr.mxu0 0.0
  %2353 = vmatpush1.msra.mxu0 %v2312
  %2354 = vmatprep.subr.mxu0 0.0
  %2355 = vmatpush1.msra.mxu0 %v2313
  %2356 = vmatprep.subr.mxu0 0.0
  %2357 = vmatpush1.msra.mxu0 %v2314
  %2358 = vmatprep.subr.mxu0 0.0
  %2359 = vmatpush1.msra.mxu0 %v2315
  %2360 = vmatprep.subr.mxu0 0.0
  %2361 = vmatpush1.msra.mxu0 %v2316
  %2362 = vmatprep.subr.mxu0 0.0
  %2363 = vmatpush1.msra.mxu0 %v2317
  %2364 = vmatprep.subr.mxu0 0.0
  %2365 = vmatpush1.msra.mxu0 %v2318
  %2366 = vmatprep.subr.mxu0 0.0
  %2367 = vmatpush1.msra.mxu0 0.0
  %2368 = vmatprep.subr.mxu0 0.0
  %2369 = vmatpush1.msra.mxu0 0.0
  %2370 = vmatprep.subr.mxu0 0.0
  %2371 = vmatpush1.msra.mxu0 0.0
  %2372 = vmatprep.subr.mxu0 0.0
  %2373 = vmatpush1.msra.mxu0 0.0
  %2374 = vmatprep.subr.mxu0 0.0
  %2375 = vmatpush1.msra.mxu0 0.0
  %2376 = vmatprep.subr.mxu0 0.0
  %2377 = vmatpush1.msra.mxu0 0.0
  %2378 = vmatprep.subr.mxu0 0.0
  %2379 = vmatpush1.msra.mxu0 0.0
  %2380 = vmatprep.subr.mxu0 0.0
  %2381 = vmatpush1.msra.mxu0 0.0
  %2382 = vmatprep.subr.mxu0 0.0
  %2383 = vmatpush1.msra.mxu0 0.0
  %2384 = vmatprep.subr.mxu0 0.0
  %2385 = vmatpush1.msra.mxu0 0.0
  %2386 = vmatprep.subr.mxu0 0.0
  %2387 = vmatpush1.msra.mxu0 0.0
  %2388 = vmatprep.subr.mxu0 0.0
  %2389 = vmatpush1.msra.mxu0 0.0
  %2390 = vmatprep.subr.mxu0 0.0
  %2391 = vmatpush1.msra.mxu0 0.0
  %2392 = vmatprep.subr.mxu0 0.0
  %2393 = vmatpush1.msra.mxu0 0.0
  %2394 = vmatprep.subr.mxu0 0.0
  %2395 = vmatpush1.msra.mxu0 0.0
  %2396 = vmatprep.subr.mxu0 0.0
  %2397 = vmatpush1.msra.mxu0 0.0
  %2398 = vmatprep.subr.mxu0 0.0
  %2399 = vmatpush1.msra.mxu0 0.0
  %2400 = vmatprep.subr.mxu0 0.0
  %2401 = vmatpush1.msra.mxu0 0.0
  %2402 = vmatprep.subr.mxu0 0.0
  %2403 = vmatpush1.msra.mxu0 0.0
  %2404 = vmatprep.subr.mxu0 0.0
  %2405 = vmatpush1.msra.mxu0 0.0
  %2406 = vmatprep.subr.mxu0 0.0
  %2407 = vmatpush1.msra.mxu0 0.0
  %2408 = vmatprep.subr.mxu0 0.0
  %2409 = vmatpush1.msra.mxu0 0.0
  %2410 = vmatprep.subr.mxu0 0.0
  %2411 = vmatpush1.msra.mxu0 0.0
  %2412 = vmatprep.subr.mxu0 0.0
  %2413 = vmatpush1.msra.mxu0 0.0
  %2414 = vmatprep.mubr.f32.mxu0 0.0
  %2415 = vmatmul.mubr.f32.gmra.mrb[0].mxu0 %v2348
  %v2416 = vpop.f32.mrb[0].mxu0
  %v2417 = vadd.f32 %v2324, %v2416
  %v2418 = vpop.f32.mrb[0].mxu0
  %2419 = vdwg.mxu0
  %v2420 = vmax.f32 %v2417, 0.0
  %v2421 = vld [vmem:[%s13] sm:$0xff]
  %v2422 = vld [vmem:[%s13 + $0x8] sm:$0xff]
  %v2423 = vld [vmem:[%s13 + $0x10] sm:$0xff]
  %v2424 = vld [vmem:[%s13 + $0x18] sm:$0xff]
  %v2425 = vld [vmem:[%s14] sm:$0x1]
  %v2427 = vlaneseq
  %v2428 = vshrl.u32 %v2427, 7
  %v2429 = vsub.s32 0, %v2428
  %v2430 = vrot.slane %v2425, %v2429
  %vm2432 = vcmask 261120
  %v2434 = vsel %vm2432, %v2420, 0
  %2436 = vmatprep.subr.mxu0 0.0
  %2437 = vmatpush1.msra.mxu0 %v2421
  %2438 = vmatprep.subr.mxu0 0.0
  %2439 = vmatpush1.msra.mxu0 %v2422
  %2440 = vmatprep.subr.mxu0 0.0
  %2441 = vmatpush1.msra.mxu0 %v2423
  %2442 = vmatprep.subr.mxu0 0.0
  %2443 = vmatpush1.msra.mxu0 %v2424
  %2444 = vmatprep.subr.mxu0 0.0
  %2445 = vmatpush1.msra.mxu0 0.0
  %2446 = vmatprep.subr.mxu0 0.0
  %2447 = vmatpush1.msra.mxu0 0.0
  %2448 = vmatprep.subr.mxu0 0.0
  %2449 = vmatpush1.msra.mxu0 0.0
  %2450 = vmatprep.subr.mxu0 0.0
  %2451 = vmatpush1.msra.mxu0 0.0
  %2452 = vmatprep.subr.mxu0 0.0
  %2453 = vmatpush1.msra.mxu0 0.0
  %2454 = vmatprep.subr.mxu0 0.0
  %2455 = vmatpush1.msra.mxu0 0.0
  %2456 = vmatprep.subr.mxu0 0.0
  %2457 = vmatpush1.msra.mxu0 0.0
  %2458 = vmatprep.subr.mxu0 0.0
  %2459 = vmatpush1.msra.mxu0 0.0
  %2460 = vmatprep.subr.mxu0 0.0
  %2461 = vmatpush1.msra.mxu0 0.0
  %2462 = vmatprep.subr.mxu0 0.0
  %2463 = vmatpush1.msra.mxu0 0.0
  %2464 = vmatprep.subr.mxu0 0.0
  %2465 = vmatpush1.msra.mxu0 0.0
  %2466 = vmatprep.subr.mxu0 0.0
  %2467 = vmatpush1.msra.mxu0 0.0
  %2468 = vmatprep.subr.mxu0 0.0
  %2469 = vmatpush1.msra.mxu0 0.0
  %2470 = vmatprep.subr.mxu0 0.0
  %2471 = vmatpush1.msra.mxu0 0.0
  %2472 = vmatprep.subr.mxu0 0.0
  %2473 = vmatpush1.msra.mxu0 0.0
  %2474 = vmatprep.subr.mxu0 0.0
  %2475 = vmatpush1.msra.mxu0 0.0
  %2476 = vmatprep.subr.mxu0 0.0
  %2477 = vmatpush1.msra.mxu0 0.0
  %2478 = vmatprep.subr.mxu0 0.0
  %2479 = vmatpush1.msra.mxu0 0.0
  %2480 = vmatprep.subr.mxu0 0.0
  %2481 = vmatpush1.msra.mxu0 0.0
  %2482 = vmatprep.subr.mxu0 0.0
  %2483 = vmatpush1.msra.mxu0 0.0
  %2484 = vmatprep.subr.mxu0 0.0
  %2485 = vmatpush1.msra.mxu0 0.0
  %2486 = vmatprep.subr.mxu0 0.0
  %2487 = vmatpush1.msra.mxu0 0.0
  %2488 = vmatprep.subr.mxu0 0.0
  %2489 = vmatpush1.msra.mxu0 0.0
  %2490 = vmatprep.subr.mxu0 0.0
  %2491 = vmatpush1.msra.mxu0 0.0
  %2492 = vmatprep.subr.mxu0 0.0
  %2493 = vmatpush1.msra.mxu0 0.0
  %2494 = vmatprep.subr.mxu0 0.0
  %2495 = vmatpush1.msra.mxu0 0.0
  %2496 = vmatprep.subr.mxu0 0.0
  %2497 = vmatpush1.msra.mxu0 0.0
  %2498 = vmatprep.subr.mxu0 0.0
  %2499 = vmatpush1.msra.mxu0 0.0
  %2500 = vmatprep.mubr.f32.mxu0 0.0
  %2501 = vmatmul.mubr.f32.gmra.mrb[0].mxu0 %v2434
  %v2502 = vpop.f32.mrb[0].mxu0
  %v2503 = vadd.f32 %v2430, %v2502
  %v2504 = vpop.f32.mrb[0].mxu0
  %2505 = vdwg.mxu0
  %v2506 = vld [vmem:[%s15] sm:$0xff]
  %v2507 = vld [vmem:[%s15 + $0x8] sm:$0xff]
  %v2508 = vld [vmem:[%s15 + $0x10] sm:$0xff]
  %v2509 = vld [vmem:[%s15 + $0x18] sm:$0xff]
  %v2510 = vld [vmem:[%s15 + $0x20] sm:$0xff]
  %v2511 = vld [vmem:[%s15 + $0x28] sm:$0xff]
  %v2512 = vld [vmem:[%s15 + $0x30] sm:$0xff]
  %v2513 = vld [vmem:[%s15 + $0x38] sm:$0xff]
  %v2514 = vld [vmem:[%s16] sm:$0x1]
  %v2516 = vlaneseq
  %v2517 = vshrl.u32 %v2516, 7
  %v2518 = vsub.s32 0, %v2517
  %v2519 = vrot.slane %v2514, %v2518
  %2521 = vmatprep.subr.mxu0 0.0
  %2522 = vmatpush1.msra.mxu0 %v2506
  %2523 = vmatprep.subr.mxu0 0.0
  %2524 = vmatpush1.msra.mxu0 %v2507
  %2525 = vmatprep.subr.mxu0 0.0
  %2526 = vmatpush1.msra.mxu0 %v2508
  %2527 = vmatprep.subr.mxu0 0.0
  %2528 = vmatpush1.msra.mxu0 %v2509
  %2529 = vmatprep.subr.mxu0 0.0
  %2530 = vmatpush1.msra.mxu0 %v2510
  %2531 = vmatprep.subr.mxu0 0.0
  %2532 = vmatpush1.msra.mxu0 %v2511
  %2533 = vmatprep.subr.mxu0 0.0
  %2534 = vmatpush1.msra.mxu0 %v2512
  %2535 = vmatprep.subr.mxu0 0.0
  %2536 = vmatpush1.msra.mxu0 %v2513
  %2537 = vmatprep.subr.mxu0 0.0
  %2538 = vmatpush1.msra.mxu0 0.0
  %2539 = vmatprep.subr.mxu0 0.0
  %2540 = vmatpush1.msra.mxu0 0.0
  %2541 = vmatprep.subr.mxu0 0.0
  %2542 = vmatpush1.msra.mxu0 0.0
  %2543 = vmatprep.subr.mxu0 0.0
  %2544 = vmatpush1.msra.mxu0 0.0
  %2545 = vmatprep.subr.mxu0 0.0
  %2546 = vmatpush1.msra.mxu0 0.0
  %2547 = vmatprep.subr.mxu0 0.0
  %2548 = vmatpush1.msra.mxu0 0.0
  %2549 = vmatprep.subr.mxu0 0.0
  %2550 = vmatpush1.msra.mxu0 0.0
  %2551 = vmatprep.subr.mxu0 0.0
  %2552 = vmatpush1.msra.mxu0 0.0
  %2553 = vmatprep.subr.mxu0 0.0
  %2554 = vmatpush1.msra.mxu0 0.0
  %2555 = vmatprep.subr.mxu0 0.0
  %2556 = vmatpush1.msra.mxu0 0.0
  %2557 = vmatprep.subr.mxu0 0.0
  %2558 = vmatpush1.msra.mxu0 0.0
  %2559 = vmatprep.subr.mxu0 0.0
  %2560 = vmatpush1.msra.mxu0 0.0
  %2561 = vmatprep.subr.mxu0 0.0
  %2562 = vmatpush1.msra.mxu0 0.0
  %2563 = vmatprep.subr.mxu0 0.0
  %2564 = vmatpush1.msra.mxu0 0.0
  %2565 = vmatprep.subr.mxu0 0.0
  %2566 = vmatpush1.msra.mxu0 0.0
  %2567 = vmatprep.subr.mxu0 0.0
  %2568 = vmatpush1.msra.mxu0 0.0
  %2569 = vmatprep.subr.mxu0 0.0
  %2570 = vmatpush1.msra.mxu0 0.0
  %2571 = vmatprep.subr.mxu0 0.0
  %2572 = vmatpush1.msra.mxu0 0.0
  %2573 = vmatprep.subr.mxu0 0.0
  %2574 = vmatpush1.msra.mxu0 0.0
  %2575 = vmatprep.subr.mxu0 0.0
  %2576 = vmatpush1.msra.mxu0 0.0
  %2577 = vmatprep.subr.mxu0 0.0
  %2578 = vmatpush1.msra.mxu0 0.0
  %2579 = vmatprep.subr.mxu0 0.0
  %2580 = vmatpush1.msra.mxu0 0.0
  %2581 = vmatprep.subr.mxu0 0.0
  %2582 = vmatpush1.msra.mxu0 0.0
  %2583 = vmatprep.subr.mxu0 0.0
  %2584 = vmatpush1.msra.mxu0 0.0
  %2585 = vmatprep.mubr.f32.mxu0 0.0
  %2586 = vmatmul.mubr.f32.gmra.mrb[0].mxu0 %v2348
  %v2587 = vpop.f32.mrb[0].mxu0
  %v2588 = vadd.f32 %v2519, %v2587
  %v2589 = vpop.f32.mrb[0].mxu0
  %2590 = vdwg.mxu0
  %v2591 = vmax.f32 %v2588, 0.0
  %v2592 = vld [vmem:[%s17] sm:$0x1]
  %v2594 = vlaneseq
  %v2595 = vshrl.u32 %v2594, 7
  %v2596 = vsub.s32 0, %v2595
  %v2597 = vrot.slane %v2592, %v2596
  %v2599 = vmul.f32 %v2591, %v2597
  %v2600 = vsel %vm2432, %v2599, 0.0
  %2601 = vadd.xlane.f32.xlu0 %v2600
  %v2602 = vpop.xlane.xlu0 %2601
  %v2603 = vld [vmem:[#allocation2] sm:$0x1]
  %v2605 = vlaneseq
  %v2606 = vshrl.u32 %v2605, 7
  %v2607 = vsub.s32 0, %v2606
  %v2608 = vrot.slane %v2603, %v2607
  %v2610 = vadd.f32 %v2602, %v2608
  %2611 = vadd.xlane.f32.xlu0 %v2503
  %v2612 = vpop.xlane.xlu0 %2611
  %v2613 = vmul.f32 %v2612, 0.125
  %v2614 = vsub.f32 %v2503, %v2613
  %2616 = vset.pattern.permute.xlu0 0
  %2617 = vperm.xlu0 %2616, %v2610
  %v2618 = vpop.permute.xlu0 %2617
  %v2620 = vadd.f32 %v2614, %v2618
  %2621 = vst [vmem:[%s19] sm:$0xff] %v2620
  // Predicated region
  $region78: #{self_attention_forward.1} parent=0 // pred_check
    _
  $region79: #{self_attention_forward.1} parent=0 // pred_check_branch
    %2623 = sbr.rel (0) target = $region81
  $region80: #{self_attention_forward.1} parent=0 // pred_region
    _
  $region81: #{self_attention_forward.1} parent=0 // pred_fallthru
    _
  // Predicated region
  $region82: #{self_attention_forward.1} parent=0 // pred_check
    _
  $region83: #{self_attention_forward.1} parent=0 // pred_check_branch
    %2625 = sbr.rel (0) target = $region85
  $region84: #{self_attention_forward.1} parent=0 // pred_region
    _
  $region85: #{self_attention_forward.1} parent=0 // pred_fallthru
    _

</llo_original>
